<compile_context>
chip_gen: v5e
topology: v5e:2x2
jax: 0.10.0
libtpu: 0.0.40
codegen_flags: <defaults>
</compile_context>

<pallas_src>
import jax
import jax.numpy as jnp
from jax.experimental import pallas as pl
from jax.experimental.pallas import tpu as pltpu


def _round_up(x, m):
    return ((x + m - 1) // m) * m


def _vae_kernel(
    x_ref,                 # (TB, D)     bf16 flattened input tile
    eps_ref,               # (TB, Lp)    f32 standard-normal noise (latent-padded)
    w_e1_ref, b_e1_ref,    # (D, Hd) bf16, (1, Hd) f32
    w_h_ref, b_h_ref,      # (Hd, 2*Lp) bf16, (1, 2*Lp) f32  fused mu||log_var head
    w_d1_ref, b_d1_ref,    # (Lp, Hd) bf16, (1, Hd) f32
    w_d2_ref, b_d2_ref,    # (Hd, D) bf16, (1, D) f32
    recon_ref,             # (TB, D)     f32
    mulv_ref,              # (TB, 2*Lp)  f32  (mu in [:, :Lp], log_var in [:, Lp:])
):
    lp = eps_ref.shape[-1]

    x = x_ref[...]                                            # bf16

    # ----- encoder -----
    h = jnp.dot(x, w_e1_ref[...],
                preferred_element_type=jnp.float32) + b_e1_ref[...]
    h = jnp.maximum(h, 0.0)

    mulv = jnp.dot(h.astype(jnp.bfloat16), w_h_ref[...],
                   preferred_element_type=jnp.float32) + b_h_ref[...]
    mu = mulv[:, :lp]
    log_var = mulv[:, lp:]

    # ----- reparameterization:  z = mu + eps * exp(0.5 * log_var)  (f32) -----
    std = jnp.exp(0.5 * log_var)                              # EUP
    z = mu + eps_ref[...] * std

    # ----- decoder -----
    hd = jnp.dot(z.astype(jnp.bfloat16), w_d1_ref[...],
                 preferred_element_type=jnp.float32) + b_d1_ref[...]
    hd = jnp.maximum(hd, 0.0)
    logits = jnp.dot(hd.astype(jnp.bfloat16), w_d2_ref[...],
                     preferred_element_type=jnp.float32) + b_d2_ref[...]

    recon_ref[...] = jax.nn.sigmoid(logits)
    mulv_ref[...] = mulv


def init_params(key, in_dim, hidden_dim, latent_dim):
    """Plain f32 params matching the PyTorch module's layout (separate heads)."""
    ks = jax.random.split(key, 5)

    def dense(k, fan_in, fan_out):
        scale = 1.0 / jnp.sqrt(fan_in)
        return scale * jax.random.normal(k, (fan_in, fan_out), jnp.float32)

    return {
        "w_e1": dense(ks[0], in_dim, hidden_dim),
        "b_e1": jnp.zeros((1, hidden_dim), jnp.float32),
        "w_mu": dense(ks[1], hidden_dim, latent_dim),
        "b_mu": jnp.zeros((1, latent_dim), jnp.float32),
        "w_lv": dense(ks[2], hidden_dim, latent_dim),
        "b_lv": jnp.zeros((1, latent_dim), jnp.float32),
        "w_d1": dense(ks[3], latent_dim, hidden_dim),
        "b_d1": jnp.zeros((1, hidden_dim), jnp.float32),
        "w_d2": dense(ks[4], hidden_dim, in_dim),
        "b_d2": jnp.zeros((1, in_dim), jnp.float32),
    }


def prepare_params(params):
    """Fuse mu/log_var heads, zero-pad latent to 128 lanes, cast weights to bf16."""
    D, Hd = params["w_e1"].shape
    L = params["w_mu"].shape[1]
    Lp = max(128, _round_up(L, 128))

    def pad_cols(w, n):
        return jnp.pad(w, ((0, 0), (0, n - w.shape[1])))

    w_h = jnp.concatenate([pad_cols(params["w_mu"], Lp),
                           pad_cols(params["w_lv"], Lp)], axis=1)     # (Hd, 2*Lp)
    b_h = jnp.concatenate([pad_cols(params["b_mu"], Lp),
                           pad_cols(params["b_lv"], Lp)], axis=1)     # (1, 2*Lp)
    w_d1 = jnp.pad(params["w_d1"], ((0, Lp - L), (0, 0)))             # (Lp, Hd)

    return {
        "D": D, "Hd": Hd, "L": L, "Lp": Lp,
        "w_e1": params["w_e1"].astype(jnp.bfloat16),
        "b_e1": params["b_e1"].astype(jnp.float32),
        "w_h": w_h.astype(jnp.bfloat16),
        "b_h": b_h.astype(jnp.float32),
        "w_d1": w_d1.astype(jnp.bfloat16),
        "b_d1": params["b_d1"].astype(jnp.float32),
        "w_d2": params["w_d2"].astype(jnp.bfloat16),
        "b_d2": params["b_d2"].astype(jnp.float32),
    }


def vae_forward(x_nchw, eps, packed, *, batch_tile=512):
    """Fused VAE forward.

    x_nchw: (B, C, H, W) float32 image batch
    eps:    (B, L) float32 standard-normal noise (mirrors torch.randn_like)
    packed: output of prepare_params()
    returns {'recon_batch': (B,C,H,W), 'mu': (B,L), 'log_var': (B,L)}
    """
    B, C, H, W = x_nchw.shape
    D, Hd, L, Lp = packed["D"], packed["Hd"], packed["L"], packed["Lp"]
    assert D == C * H * W

    # Batch tiling: one large tile when the batch fits (minimizes per-step
    # pipeline overhead); otherwise `batch_tile`-row tiles.  Always a multiple
    # of 16 so bf16 sublane packing stays aligned.
    tb = min(batch_tile, _round_up(max(B, 1), 16))
    Bp = _round_up(B, tb)
    n_tiles = Bp // tb

    x_flat = jnp.pad(x_nchw.reshape(B, D).astype(jnp.bfloat16),
                     ((0, Bp - B), (0, 0)))
    eps_p = jnp.pad(eps.astype(jnp.float32),
                    ((0, Bp - B), (0, Lp - L)))

    row = lambda i: (i, 0)          # batch-tiled tensors
    const = lambda i: (0, 0)        # weights/biases: VMEM-resident across steps

    def wspec(arr):
        return pl.BlockSpec(arr.shape, const)

    in_specs = [
        pl.BlockSpec((tb, D), row),
        pl.BlockSpec((tb, Lp), row),
        wspec(packed["w_e1"]), wspec(packed["b_e1"]),
        wspec(packed["w_h"]), wspec(packed["b_h"]),
        wspec(packed["w_d1"]), wspec(packed["b_d1"]),
        wspec(packed["w_d2"]), wspec(packed["b_d2"]),
    ]
    out_specs = (
        pl.BlockSpec((tb, D), row),
        pl.BlockSpec((tb, 2 * Lp), row),
    )
    out_shape = (
        jax.ShapeDtypeStruct((Bp, D), jnp.float32),
        jax.ShapeDtypeStruct((Bp, 2 * Lp), jnp.float32),
    )

    # VMEM budget: resident weights + double-buffered activation tiles + margin.
    weight_bytes = int(sum(a.size * a.dtype.itemsize for a in (
        packed["w_e1"], packed["b_e1"], packed["w_h"], packed["b_h"],
        packed["w_d1"], packed["b_d1"], packed["w_d2"], packed["b_d2"])))
    tile_bytes = 2 * (tb * D * 2 + tb * Lp * 4 + tb * D * 4 + tb * 2 * Lp * 4)
    scratch_bytes = tb * Hd * 4 * 2 + tb * 2 * Lp * 4 * 2 + tb * D * 4
    vmem_limit = int(min(64 * 1024 * 1024,
                         max(2 * (weight_bytes + tile_bytes + scratch_bytes),
                             16 * 1024 * 1024)))

    flops = int(2 * Bp * (D * Hd + Hd * 2 * Lp + Lp * Hd + Hd * D))
    bytes_accessed = int(weight_bytes + Bp * D * 2 + Bp * Lp * 4
                         + Bp * D * 4 + Bp * 2 * Lp * 4)

    recon_flat, mulv = pl.pallas_call(
        _vae_kernel,
        out_shape=out_shape,
        grid=(n_tiles,),
        in_specs=in_specs,
        out_specs=out_specs,
        compiler_params=pltpu.CompilerParams(
            dimension_semantics=("parallel",),
            vmem_limit_bytes=vmem_limit,
        ),
        cost_estimate=pl.CostEstimate(
            flops=flops,
            transcendentals=int(Bp * (Lp + D)),
            bytes_accessed=bytes_accessed,
        ),
    )(
        x_flat, eps_p,
        packed["w_e1"], packed["b_e1"],
        packed["w_h"], packed["b_h"],
        packed["w_d1"], packed["b_d1"],
        packed["w_d2"], packed["b_d2"],
    )

    return {
        "recon_batch": recon_flat[:B].reshape(B, C, H, W),
        "mu": mulv[:B, :L],
        "log_var": mulv[:B, Lp:Lp + L],
    }


if __name__ == "__main__":
    # Small shapes consistent with the module's NCHW forward.
    B, C, H, W = 2, 4, 16, 16
    D = C * H * W            # 1024
    HIDDEN = 128
    LATENT = 32

    root = jax.random.PRNGKey(0)
    k_x, k_eps, k_params = jax.random.split(root, 3)

    x = jax.random.uniform(k_x, (B, C, H, W), jnp.float32)        # image-like input
    # TODO(synk): torch.randn_like noise is drawn outside the kernel (could use
    # pltpu.prng_seed + stateful_normal in-kernel; kept external so the result
    # is deterministic and checkable against a pure-JAX reference).
    eps = jax.random.normal(k_eps, (B, LATENT), jnp.float32)

    params = init_params(k_params, D, HIDDEN, LATENT)
    packed = prepare_params(params)

    out = vae_forward(x, eps, packed)
    jax.block_until_ready(out)

    # Pure-JAX reference of the same (bf16-matmul, f32-accumulate) math.
    L, Lp = packed["L"], packed["Lp"]
    xb = x.reshape(B, D).astype(jnp.bfloat16)
    h = jnp.maximum(jnp.dot(xb, packed["w_e1"],
                            preferred_element_type=jnp.float32) + packed["b_e1"], 0.0)
    mulv_r = jnp.dot(h.astype(jnp.bfloat16), packed["w_h"],
                     preferred_element_type=jnp.float32) + packed["b_h"]
    mu_r = mulv_r[:, :L]
    lv_r = mulv_r[:, Lp:Lp + L]
    eps_pad = jnp.pad(eps, ((0, 0), (0, Lp - L)))
    z_r = mulv_r[:, :Lp] + eps_pad * jnp.exp(0.5 * mulv_r[:, Lp:])
    hd_r = jnp.maximum(jnp.dot(z_r.astype(jnp.bfloat16), packed["w_d1"],
                               preferred_element_type=jnp.float32) + packed["b_d1"], 0.0)
    recon_r = jax.nn.sigmoid(
        jnp.dot(hd_r.astype(jnp.bfloat16), packed["w_d2"],
                preferred_element_type=jnp.float32) + packed["b_d2"]
    ).reshape(B, C, H, W)

    assert jnp.allclose(out["mu"], mu_r, atol=2e-3, rtol=2e-3)
    assert jnp.allclose(out["log_var"], lv_r, atol=2e-3, rtol=2e-3)
    assert jnp.allclose(out["recon_batch"], recon_r, atol=2e-3, rtol=2e-3)

    print("KERNEL_OK")
</pallas_src>

<mosaic_0001>
module attributes {stable_mosaic.version = 11 : i64} {
  func.func @_vae_kernel(%arg0: i32, %arg1: memref<16x1024xbf16, #tpu.memory_space<vmem>>, %arg2: memref<16x128xf32, #tpu.memory_space<vmem>>, %arg3: memref<1024x128xbf16, #tpu.memory_space<vmem>>, %arg4: memref<1x128xf32, #tpu.memory_space<vmem>>, %arg5: memref<128x256xbf16, #tpu.memory_space<vmem>>, %arg6: memref<1x256xf32, #tpu.memory_space<vmem>>, %arg7: memref<128x128xbf16, #tpu.memory_space<vmem>>, %arg8: memref<1x128xf32, #tpu.memory_space<vmem>>, %arg9: memref<128x1024xbf16, #tpu.memory_space<vmem>>, %arg10: memref<1x1024xf32, #tpu.memory_space<vmem>>, %arg11: memref<16x1024xf32, #tpu.memory_space<vmem>>, %arg12: memref<16x256xf32, #tpu.memory_space<vmem>>) attributes {dimension_semantics = [#tpu.dimension_semantics<parallel>], iteration_bounds = array<i64: 1>, scalar_prefetch = 0 : i64, scratch_operands = 0 : i64, tpu.core_type = #tpu.core_type<tc>, window_params = [{transform_indices = @transform_0, window_bounds = array<i64: 16, 1024>}, {transform_indices = @transform_1, window_bounds = array<i64: 16, 128>}, {pipeline_mode = #tpu.pipeline_mode<synchronous>, transform_indices = @transform_2, window_bounds = array<i64: 1024, 128>}, {pipeline_mode = #tpu.pipeline_mode<synchronous>, transform_indices = @transform_3, window_bounds = array<i64: 1, 128>}, {pipeline_mode = #tpu.pipeline_mode<synchronous>, transform_indices = @transform_4, window_bounds = array<i64: 128, 256>}, {pipeline_mode = #tpu.pipeline_mode<synchronous>, transform_indices = @transform_5, window_bounds = array<i64: 1, 256>}, {pipeline_mode = #tpu.pipeline_mode<synchronous>, transform_indices = @transform_6, window_bounds = array<i64: 128, 128>}, {pipeline_mode = #tpu.pipeline_mode<synchronous>, transform_indices = @transform_7, window_bounds = array<i64: 1, 128>}, {pipeline_mode = #tpu.pipeline_mode<synchronous>, transform_indices = @transform_8, window_bounds = array<i64: 128, 1024>}, {pipeline_mode = #tpu.pipeline_mode<synchronous>, transform_indices = @transform_9, window_bounds = array<i64: 1, 1024>}, {transform_indices = @transform_10, window_bounds = array<i64: 16, 1024>}, {transform_indices = @transform_11, window_bounds = array<i64: 16, 256>}]} {
    %c0 = arith.constant 0 : index
    %c0_0 = arith.constant 0 : index
    %0 = vector.load %arg1[%c0, %c0_0] : memref<16x1024xbf16, #tpu.memory_space<vmem>>, vector<16x1024xbf16>
    %c0_1 = arith.constant 0 : index
    %c0_2 = arith.constant 0 : index
    %1 = vector.load %arg3[%c0_1, %c0_2] : memref<1024x128xbf16, #tpu.memory_space<vmem>>, vector<1024x128xbf16>
    %cst = arith.constant dense<0.000000e+00> : vector<16x128xf32>
    %2 = tpu.matmul %0, %1, %cst {dimension_numbers = #tpu.dot_dimension_numbers<[1], [0], [0], [1], [0, 0, 1, 1], [], []>} : vector<16x1024xbf16>, vector<1024x128xbf16>, vector<16x128xf32> -> vector<16x128xf32>
    %c0_3 = arith.constant 0 : index
    %c0_4 = arith.constant 0 : index
    %3 = vector.load %arg4[%c0_3, %c0_4] : memref<1x128xf32, #tpu.memory_space<vmem>>, vector<1x128xf32>
    %4 = vector.broadcast %3 : vector<1x128xf32> to vector<16x128xf32>
    %5 = arith.addf %2, %4 : vector<16x128xf32>
    %cst_5 = arith.constant 0.000000e+00 : f32
    %6 = vector.broadcast %cst_5 : f32 to vector<16x128xf32>
    %7 = arith.maximumf %5, %6 : vector<16x128xf32>
    %8 = arith.truncf %7 : vector<16x128xf32> to vector<16x128xbf16>
    %c0_6 = arith.constant 0 : index
    %c0_7 = arith.constant 0 : index
    %9 = vector.load %arg5[%c0_6, %c0_7] : memref<128x256xbf16, #tpu.memory_space<vmem>>, vector<128x256xbf16>
    %cst_8 = arith.constant dense<0.000000e+00> : vector<16x256xf32>
    %10 = tpu.matmul %8, %9, %cst_8 {dimension_numbers = #tpu.dot_dimension_numbers<[1], [0], [0], [1], [0, 0, 1, 1], [], []>} : vector<16x128xbf16>, vector<128x256xbf16>, vector<16x256xf32> -> vector<16x256xf32>
    %c0_9 = arith.constant 0 : index
    %c0_10 = arith.constant 0 : index
    %11 = vector.load %arg6[%c0_9, %c0_10] : memref<1x256xf32, #tpu.memory_space<vmem>>, vector<1x256xf32>
    %12 = vector.broadcast %11 : vector<1x256xf32> to vector<16x256xf32>
    %13 = arith.addf %10, %12 : vector<16x256xf32>
    %14 = vector.extract_strided_slice %13 {offsets = [0, 0], sizes = [16, 128], strides = [1, 1]} : vector<16x256xf32> to vector<16x128xf32>
    %15 = vector.extract_strided_slice %13 {offsets = [0, 128], sizes = [16, 128], strides = [1, 1]} : vector<16x256xf32> to vector<16x128xf32>
    %cst_11 = arith.constant 5.000000e-01 : f32
    %16 = vector.broadcast %cst_11 : f32 to vector<16x128xf32>
    %17 = arith.mulf %16, %15 : vector<16x128xf32>
    %18 = math.exp %17 : vector<16x128xf32>
    %c0_12 = arith.constant 0 : index
    %c0_13 = arith.constant 0 : index
    %19 = vector.load %arg2[%c0_12, %c0_13] : memref<16x128xf32, #tpu.memory_space<vmem>>, vector<16x128xf32>
    %20 = arith.mulf %19, %18 : vector<16x128xf32>
    %21 = arith.addf %14, %20 : vector<16x128xf32>
    %22 = arith.truncf %21 : vector<16x128xf32> to vector<16x128xbf16>
    %c0_14 = arith.constant 0 : index
    %c0_15 = arith.constant 0 : index
    %23 = vector.load %arg7[%c0_14, %c0_15] : memref<128x128xbf16, #tpu.memory_space<vmem>>, vector<128x128xbf16>
    %cst_16 = arith.constant dense<0.000000e+00> : vector<16x128xf32>
    %24 = tpu.matmul %22, %23, %cst_16 {dimension_numbers = #tpu.dot_dimension_numbers<[1], [0], [0], [1], [0, 0, 1, 1], [], []>} : vector<16x128xbf16>, vector<128x128xbf16>, vector<16x128xf32> -> vector<16x128xf32>
    %c0_17 = arith.constant 0 : index
    %c0_18 = arith.constant 0 : index
    %25 = vector.load %arg8[%c0_17, %c0_18] : memref<1x128xf32, #tpu.memory_space<vmem>>, vector<1x128xf32>
    %26 = vector.broadcast %25 : vector<1x128xf32> to vector<16x128xf32>
    %27 = arith.addf %24, %26 : vector<16x128xf32>
    %cst_19 = arith.constant 0.000000e+00 : f32
    %28 = vector.broadcast %cst_19 : f32 to vector<16x128xf32>
    %29 = arith.maximumf %27, %28 : vector<16x128xf32>
    %30 = arith.truncf %29 : vector<16x128xf32> to vector<16x128xbf16>
    %c0_20 = arith.constant 0 : index
    %c0_21 = arith.constant 0 : index
    %31 = vector.load %arg9[%c0_20, %c0_21] : memref<128x1024xbf16, #tpu.memory_space<vmem>>, vector<128x1024xbf16>
    %cst_22 = arith.constant dense<0.000000e+00> : vector<16x1024xf32>
    %32 = tpu.matmul %30, %31, %cst_22 {dimension_numbers = #tpu.dot_dimension_numbers<[1], [0], [0], [1], [0, 0, 1, 1], [], []>} : vector<16x128xbf16>, vector<128x1024xbf16>, vector<16x1024xf32> -> vector<16x1024xf32>
    %c0_23 = arith.constant 0 : index
    %c0_24 = arith.constant 0 : index
    %33 = vector.load %arg10[%c0_23, %c0_24] : memref<1x1024xf32, #tpu.memory_space<vmem>>, vector<1x1024xf32>
    %34 = vector.broadcast %33 : vector<1x1024xf32> to vector<16x1024xf32>
    %35 = arith.addf %32, %34 : vector<16x1024xf32>
    %36 = arith.negf %35 : vector<16x1024xf32>
    %37 = math.exp %36 : vector<16x1024xf32>
    %cst_25 = arith.constant 1.000000e+00 : f32
    %38 = vector.broadcast %cst_25 : f32 to vector<16x1024xf32>
    %39 = arith.addf %38, %37 : vector<16x1024xf32>
    %40 = arith.divf %38, %39 : vector<16x1024xf32>
    %c0_26 = arith.constant 0 : index
    %c0_27 = arith.constant 0 : index
    %41 = vector.load %arg11[%c0_26, %c0_27] : memref<16x1024xf32, #tpu.memory_space<vmem>>, vector<16x1024xf32>
    tpu.vector_store %arg11[%c0_26, %c0_27], %40 {strides = array<i32>} : memref<16x1024xf32, #tpu.memory_space<vmem>>, vector<16x1024xf32>,
    %c0_28 = arith.constant 0 : index
    %c0_29 = arith.constant 0 : index
    %42 = vector.load %arg12[%c0_28, %c0_29] : memref<16x256xf32, #tpu.memory_space<vmem>>, vector<16x256xf32>
    tpu.vector_store %arg12[%c0_28, %c0_29], %13 {strides = array<i32>} : memref<16x256xf32, #tpu.memory_space<vmem>>, vector<16x256xf32>,
    return
  }
  func.func @transform_0(%arg0: i32) -> (i32, i32) {
    %c0_i32 = arith.constant 0 : i32
    %c0_i32_0 = arith.constant 0 : i32
    return %arg0, %c0_i32 : i32, i32
  }
  func.func @transform_1(%arg0: i32) -> (i32, i32) {
    %c0_i32 = arith.constant 0 : i32
    %c0_i32_0 = arith.constant 0 : i32
    return %arg0, %c0_i32 : i32, i32
  }
  func.func @transform_2(%arg0: i32) -> (i32, i32) {
    %c0_i32 = arith.constant 0 : i32
    %c0_i32_0 = arith.constant 0 : i32
    %c0_i32_1 = arith.constant 0 : i32
    return %c0_i32, %c0_i32_0 : i32, i32
  }
  func.func @transform_3(%arg0: i32) -> (i32, i32) {
    %c0_i32 = arith.constant 0 : i32
    %c0_i32_0 = arith.constant 0 : i32
    %c0_i32_1 = arith.constant 0 : i32
    return %c0_i32, %c0_i32_0 : i32, i32
  }
  func.func @transform_4(%arg0: i32) -> (i32, i32) {
    %c0_i32 = arith.constant 0 : i32
    %c0_i32_0 = arith.constant 0 : i32
    %c0_i32_1 = arith.constant 0 : i32
    return %c0_i32, %c0_i32_0 : i32, i32
  }
  func.func @transform_5(%arg0: i32) -> (i32, i32) {
    %c0_i32 = arith.constant 0 : i32
    %c0_i32_0 = arith.constant 0 : i32
    %c0_i32_1 = arith.constant 0 : i32
    return %c0_i32, %c0_i32_0 : i32, i32
  }
  func.func @transform_6(%arg0: i32) -> (i32, i32) {
    %c0_i32 = arith.constant 0 : i32
    %c0_i32_0 = arith.constant 0 : i32
    %c0_i32_1 = arith.constant 0 : i32
    return %c0_i32, %c0_i32_0 : i32, i32
  }
  func.func @transform_7(%arg0: i32) -> (i32, i32) {
    %c0_i32 = arith.constant 0 : i32
    %c0_i32_0 = arith.constant 0 : i32
    %c0_i32_1 = arith.constant 0 : i32
    return %c0_i32, %c0_i32_0 : i32, i32
  }
  func.func @transform_8(%arg0: i32) -> (i32, i32) {
    %c0_i32 = arith.constant 0 : i32
    %c0_i32_0 = arith.constant 0 : i32
    %c0_i32_1 = arith.constant 0 : i32
    return %c0_i32, %c0_i32_0 : i32, i32
  }
  func.func @transform_9(%arg0: i32) -> (i32, i32) {
    %c0_i32 = arith.constant 0 : i32
    %c0_i32_0 = arith.constant 0 : i32
    %c0_i32_1 = arith.constant 0 : i32
    return %c0_i32, %c0_i32_0 : i32, i32
  }
  func.func @transform_10(%arg0: i32) -> (i32, i32) {
    %c0_i32 = arith.constant 0 : i32
    %c0_i32_0 = arith.constant 0 : i32
    return %arg0, %c0_i32 : i32, i32
  }
  func.func @transform_11(%arg0: i32) -> (i32, i32) {
    %c0_i32 = arith.constant 0 : i32
    %c0_i32_0 = arith.constant 0 : i32
    return %arg0, %c0_i32 : i32, i32
  }
}

</mosaic_0001>

<llo_original>
// kernel: tpu_custom_call.1
$region0: #{tpu_custom_call.1}
  #allocation0 [shape = 'u32[]', space=smem, size = 0x4, offset = 0x4, fixed_abs, tag = 'smem constant byte address 0x4 - core index']
  #allocation1 [shape = 'u32[72,128]{1,0:T(1,128)}', space=vmem, size = 0x9000, scoped, tag = 'internal scratch']
  %s0 = inlined_call_operand.hbm [shape: bf16[16,1024], index: 0, kind: input, shape index: {}]
  %s1 = inlined_call_operand.hbm [shape: f32[16,128], index: 1, kind: input, shape index: {}]
  %s2 = inlined_call_operand.hbm [shape: bf16[1024,128], index: 2, kind: input, shape index: {}]
  %s3 = inlined_call_operand.hbm [shape: f32[1,128], index: 3, kind: input, shape index: {}]
  %s4 = inlined_call_operand.hbm [shape: bf16[128,256], index: 4, kind: input, shape index: {}]
  %s5 = inlined_call_operand.hbm [shape: f32[1,256], index: 5, kind: input, shape index: {}]
  %s6 = inlined_call_operand.hbm [shape: bf16[128,128], index: 6, kind: input, shape index: {}]
  %s7 = inlined_call_operand.hbm [shape: f32[1,128], index: 7, kind: input, shape index: {}]
  %s8 = inlined_call_operand.hbm [shape: bf16[128,1024], index: 8, kind: input, shape index: {}]
  %s9 = inlined_call_operand.vmem [shape: f32[1,1024], index: 9, kind: input, shape index: {}]
  %s10 = inlined_call_operand.hbm [shape: f32[16,1024], index: 10, kind: output, shape index: {0}]
  %s11 = inlined_call_operand.hbm [shape: f32[16,256], index: 11, kind: output, shape index: {1}]
  %12 = xla_tuple %s10, %s11
  %s13 = sld [smem:[#allocation0]]
  $region94: #{tpu_custom_call.1} parent=0
    _
  %s15 = ssub.s32 1, %s13
  %s16 = scalar_select 0, %s15, %s13
  $region1: #{tpu_custom_call.1} parent=0
    #allocation2 [shape = 'u8[32768]{0}', space=vmem, size = 0x8000, scoped, tag = 'input window, operand 0, single buffered']
    #allocation3 [shape = 's32[1]{0}', space=sflag, size = 0x4, scoped, tag = 'scoped memory for tpu_custom_call.1']
    #allocation4 [shape = 's32[1]{0}', space=sflag, size = 0x4, scoped, tag = 'scoped memory for tpu_custom_call.1']
    #allocation5 [shape = 'u8[8192]{0}', space=vmem, size = 0x2000, scoped, tag = 'input window, operand 1, single buffered']
    #allocation6 [shape = 's32[1]{0}', space=sflag, size = 0x4, scoped, tag = 'scoped memory for tpu_custom_call.1']
    #allocation7 [shape = 'u8[262144]{0}', space=vmem, size = 0x40000, scoped, tag = 'input window, operand 2, single buffered']
    #allocation8 [shape = 'u8[512]{0}', space=vmem, size = 0x400, scoped, tag = 'input window, operand 3, single buffered']
    #allocation9 [shape = 's32[1]{0}', space=sflag, size = 0x4, scoped, tag = 'scoped memory for tpu_custom_call.1']
    #allocation10 [shape = 'u8[65536]{0}', space=vmem, size = 0x10000, scoped, tag = 'input window, operand 4, single buffered']
    #allocation11 [shape = 'u8[1024]{0}', space=vmem, size = 0x400, scoped, tag = 'input window, operand 5, single buffered']
    #allocation12 [shape = 's32[1]{0}', space=sflag, size = 0x4, scoped, tag = 'scoped memory for tpu_custom_call.1']
    #allocation13 [shape = 'u8[32768]{0}', space=vmem, size = 0x8000, scoped, tag = 'input window, operand 6, single buffered']
    #allocation14 [shape = 'u8[512]{0}', space=vmem, size = 0x400, scoped, tag = 'input window, operand 7, single buffered']
    #allocation15 [shape = 's32[1]{0}', space=sflag, size = 0x4, scoped, tag = 'scoped memory for tpu_custom_call.1']
    #allocation16 [shape = 'u8[262144]{0}', space=vmem, size = 0x40000, scoped, tag = 'input window, operand 8, single buffered']
    #allocation17 [shape = 'u8[65536]{0}', space=vmem, size = 0x10000, scoped, tag = 'output window, operand 0, single buffered']
    #allocation18 [shape = 'u8[16384]{0}', space=vmem, size = 0x4000, scoped, tag = 'output window, operand 1, single buffered']
    #allocation19 [shape = 's32[1]{0}', space=sflag, size = 0x4, scoped, tag = 'scoped memory for tpu_custom_call.1']
    %17 = vsyncpa [#allocation3], 0
    %18 = vsyncpa [#allocation6], 0
    %19 = vsyncpa [#allocation9], 0
    %20 = vsyncpa [#allocation12], 0
    %21 = vsyncpa [#allocation15], 0
    %22 = vsyncpa [#allocation4], 0
    %23 = vsyncpa [#allocation19], 0
    // Predicated region
    $region2: #{tpu_custom_call.1} parent=1 // pred_check
      _
    $region3: #{tpu_custom_call.1} parent=1 // pred_check_branch
      %25 = sbr.rel (0) target = $region5
    $region4: #{tpu_custom_call.1} parent=1 // pred_region
      %27 = vsyncadd [#allocation3], 0
      %s28 = sshll.u32 %s0, 4
      %s29 = int_to_ptr.hbm [resolvable:$true] %s28
      %s30 = sshll.u32 [#allocation2], 4
      %s31 = int_to_ptr.vmem [resolvable:$true] %s30
      %36 = dma.hbm_to_vmem [thread:$0]  %s29, 1024, %s31, [#allocation3], 512, 512, 32
    $region5: #{tpu_custom_call.1} parent=1 // pred_fallthru
      _
    // Predicated region
    $region6: #{tpu_custom_call.1} parent=1 // pred_check
      _
    $region7: #{tpu_custom_call.1} parent=1 // pred_check_branch
      %38 = sbr.rel (0) target = $region9
    $region8: #{tpu_custom_call.1} parent=1 // pred_region
      %40 = vsyncadd [#allocation6], 0
      %s41 = sshll.u32 %s1, 4
      %s42 = int_to_ptr.hbm [resolvable:$true] %s41
      %s43 = sshll.u32 [#allocation5], 4
      %s44 = int_to_ptr.vmem [resolvable:$true] %s43
      %49 = dma.hbm_to_vmem [thread:$0]  %s42, 256, %s44, [#allocation6], 128, 128, 8
    $region9: #{tpu_custom_call.1} parent=1 // pred_fallthru
      _
    // Predicated region
    $region10: #{tpu_custom_call.1} parent=1 // pred_check
      _
    $region11: #{tpu_custom_call.1} parent=1 // pred_check_branch
      %51 = sbr.rel (0) target = $region13
    $region12: #{tpu_custom_call.1} parent=1 // pred_region
      %53 = vsyncadd [#allocation6], 0
      %s54 = sshll.u32 %s2, 4
      %s55 = int_to_ptr.hbm [resolvable:$true] %s54
      %s56 = sshll.u32 [#allocation7], 4
      %s57 = int_to_ptr.vmem [resolvable:$true] %s56
      %62 = dma.hbm_to_vmem [thread:$0]  %s55, 8192, %s57, [#allocation6], 64, 64, 4
    $region13: #{tpu_custom_call.1} parent=1 // pred_fallthru
      _
    // Predicated region
    $region14: #{tpu_custom_call.1} parent=1 // pred_check
      _
    $region15: #{tpu_custom_call.1} parent=1 // pred_check_branch
      %64 = sbr.rel (0) target = $region17
    $region16: #{tpu_custom_call.1} parent=1 // pred_region
      %66 = vsyncadd [#allocation9], 0
      %s68 = sshll.u32 %s3, 4
      %s69 = int_to_ptr.hbm [resolvable:$true] %s68
      %s70 = sshll.u32 [#allocation8], 4
      %s71 = int_to_ptr.vmem [resolvable:$true] %s70
      %73 = dma.hbm_to_vmem [thread:$0]  %s69, 16, %s71, [#allocation9]
    $region17: #{tpu_custom_call.1} parent=1 // pred_fallthru
      _
    // Predicated region
    $region18: #{tpu_custom_call.1} parent=1 // pred_check
      _
    $region19: #{tpu_custom_call.1} parent=1 // pred_check_branch
      %75 = sbr.rel (0) target = $region21
    $region20: #{tpu_custom_call.1} parent=1 // pred_region
      %77 = vsyncadd [#allocation9], 0
      %s78 = sshll.u32 %s4, 4
      %s79 = int_to_ptr.hbm [resolvable:$true] %s78
      %s80 = sshll.u32 [#allocation10], 4
      %s81 = int_to_ptr.vmem [resolvable:$true] %s80
      %86 = dma.hbm_to_vmem [thread:$0]  %s79, 2048, %s81, [#allocation9], 128, 128, 8
    $region21: #{tpu_custom_call.1} parent=1 // pred_fallthru
      _
    // Predicated region
    $region22: #{tpu_custom_call.1} parent=1 // pred_check
      _
    $region23: #{tpu_custom_call.1} parent=1 // pred_check_branch
      %88 = sbr.rel (0) target = $region25
    $region24: #{tpu_custom_call.1} parent=1 // pred_region
      %90 = vsyncadd [#allocation12], 0
      %s92 = sshll.u32 %s5, 4
      %s93 = int_to_ptr.hbm [resolvable:$true] %s92
      %s94 = sshll.u32 [#allocation11], 4
      %s95 = int_to_ptr.vmem [resolvable:$true] %s94
      %97 = dma.hbm_to_vmem [thread:$0]  %s93, 32, %s95, [#allocation12]
    $region25: #{tpu_custom_call.1} parent=1 // pred_fallthru
      _
    // Predicated region
    $region26: #{tpu_custom_call.1} parent=1 // pred_check
      _
    $region27: #{tpu_custom_call.1} parent=1 // pred_check_branch
      %99 = sbr.rel (0) target = $region29
    $region28: #{tpu_custom_call.1} parent=1 // pred_region
      %101 = vsyncadd [#allocation12], 0
      %s102 = sshll.u32 %s6, 4
      %s103 = int_to_ptr.hbm [resolvable:$true] %s102
      %s104 = sshll.u32 [#allocation13], 4
      %s105 = int_to_ptr.vmem [resolvable:$true] %s104
      %110 = dma.hbm_to_vmem [thread:$0]  %s103, 1024, %s105, [#allocation12], 64, 64, 4
    $region29: #{tpu_custom_call.1} parent=1 // pred_fallthru
      _
    // Predicated region
    $region30: #{tpu_custom_call.1} parent=1 // pred_check
      _
    $region31: #{tpu_custom_call.1} parent=1 // pred_check_branch
      %112 = sbr.rel (0) target = $region33
    $region32: #{tpu_custom_call.1} parent=1 // pred_region
      %114 = vsyncadd [#allocation15], 0
      %s116 = sshll.u32 %s7, 4
      %s117 = int_to_ptr.hbm [resolvable:$true] %s116
      %s118 = sshll.u32 [#allocation14], 4
      %s119 = int_to_ptr.vmem [resolvable:$true] %s118
      %121 = dma.hbm_to_vmem [thread:$0]  %s117, 16, %s119, [#allocation15]
    $region33: #{tpu_custom_call.1} parent=1 // pred_fallthru
      _
    // Predicated region
    $region34: #{tpu_custom_call.1} parent=1 // pred_check
      _
    $region35: #{tpu_custom_call.1} parent=1 // pred_check_branch
      %123 = sbr.rel (0) target = $region37
    $region36: #{tpu_custom_call.1} parent=1 // pred_region
      %125 = vsyncadd [#allocation15], 0
      %s126 = sshll.u32 %s8, 4
      %s127 = int_to_ptr.hbm [resolvable:$true] %s126
      %s128 = sshll.u32 [#allocation16], 4
      %s129 = int_to_ptr.vmem [resolvable:$true] %s128
      %134 = dma.hbm_to_vmem [thread:$0]  %s127, 8192, %s129, [#allocation15], 512, 512, 32
    $region37: #{tpu_custom_call.1} parent=1 // pred_fallthru
      _
    // Predicated region
    $region38: #{tpu_custom_call.1} parent=1 // pred_check
      _
    $region39: #{tpu_custom_call.1} parent=1 // pred_check_branch
      %136 = sbr.rel (0) target = $region41
    $region40: #{tpu_custom_call.1} parent=1 // pred_region
      _
    $region41: #{tpu_custom_call.1} parent=1 // pred_fallthru
      _
    // Predicated region
    $region42: #{tpu_custom_call.1} parent=1 // pred_check
      _
    $region43: #{tpu_custom_call.1} parent=1 // pred_check_branch
      %138 = sbr.rel (0) target = $region45
    $region44: #{tpu_custom_call.1} parent=1 // pred_region
      %140 = dma.done [#allocation3], 1024
    $region45: #{tpu_custom_call.1} parent=1 // pred_fallthru
      _
    // Predicated region
    $region46: #{tpu_custom_call.1} parent=1 // pred_check
      _
    $region47: #{tpu_custom_call.1} parent=1 // pred_check_branch
      %142 = sbr.rel (0) target = $region49
    $region48: #{tpu_custom_call.1} parent=1 // pred_region
      %144 = dma.done [#allocation6], 256
    $region49: #{tpu_custom_call.1} parent=1 // pred_fallthru
      _
    // Predicated region
    $region50: #{tpu_custom_call.1} parent=1 // pred_check
      _
    $region51: #{tpu_custom_call.1} parent=1 // pred_check_branch
      %146 = sbr.rel (0) target = $region53
    $region52: #{tpu_custom_call.1} parent=1 // pred_region
      %148 = dma.done [#allocation6], 8192
    $region53: #{tpu_custom_call.1} parent=1 // pred_fallthru
      _
    // Predicated region
    $region54: #{tpu_custom_call.1} parent=1 // pred_check
      _
    $region55: #{tpu_custom_call.1} parent=1 // pred_check_branch
      %150 = sbr.rel (0) target = $region57
    $region56: #{tpu_custom_call.1} parent=1 // pred_region
      %152 = dma.done [#allocation9], 16
    $region57: #{tpu_custom_call.1} parent=1 // pred_fallthru
      _
    // Predicated region
    $region58: #{tpu_custom_call.1} parent=1 // pred_check
      _
    $region59: #{tpu_custom_call.1} parent=1 // pred_check_branch
      %154 = sbr.rel (0) target = $region61
    $region60: #{tpu_custom_call.1} parent=1 // pred_region
      %156 = dma.done [#allocation9], 2048
    $region61: #{tpu_custom_call.1} parent=1 // pred_fallthru
      _
    // Predicated region
    $region62: #{tpu_custom_call.1} parent=1 // pred_check
      _
    $region63: #{tpu_custom_call.1} parent=1 // pred_check_branch
      %158 = sbr.rel (0) target = $region65
    $region64: #{tpu_custom_call.1} parent=1 // pred_region
      %160 = dma.done [#allocation12], 32
    $region65: #{tpu_custom_call.1} parent=1 // pred_fallthru
      _
    // Predicated region
    $region66: #{tpu_custom_call.1} parent=1 // pred_check
      _
    $region67: #{tpu_custom_call.1} parent=1 // pred_check_branch
      %162 = sbr.rel (0) target = $region69
    $region68: #{tpu_custom_call.1} parent=1 // pred_region
      %164 = dma.done [#allocation12], 1024
    $region69: #{tpu_custom_call.1} parent=1 // pred_fallthru
      _
    // Predicated region
    $region70: #{tpu_custom_call.1} parent=1 // pred_check
      _
    $region71: #{tpu_custom_call.1} parent=1 // pred_check_branch
      %166 = sbr.rel (0) target = $region73
    $region72: #{tpu_custom_call.1} parent=1 // pred_region
      %168 = dma.done [#allocation15], 16
    $region73: #{tpu_custom_call.1} parent=1 // pred_fallthru
      _
    // Predicated region
    $region74: #{tpu_custom_call.1} parent=1 // pred_check
      _
    $region75: #{tpu_custom_call.1} parent=1 // pred_check_branch
      %170 = sbr.rel (0) target = $region77
    $region76: #{tpu_custom_call.1} parent=1 // pred_region
      %172 = dma.done [#allocation15], 8192
    $region77: #{tpu_custom_call.1} parent=1 // pred_fallthru
      _
    %v173 = vld [vmem:[#allocation2] sm:$0xff]
    %v174 = vld [vmem:[#allocation2 + $0x8] sm:$0xff]
    %v175 = vld [vmem:[#allocation2 + $0x10] sm:$0xff]
    %v176 = vld [vmem:[#allocation2 + $0x18] sm:$0xff]
    %v177 = vld [vmem:[#allocation2 + $0x20] sm:$0xff]
    %v178 = vld [vmem:[#allocation2 + $0x28] sm:$0xff]
    %v179 = vld [vmem:[#allocation2 + $0x30] sm:$0xff]
    %v180 = vld [vmem:[#allocation2 + $0x38] sm:$0xff]
    %v181 = vld [vmem:[#allocation7] sm:$0xf]
    %v182 = vld [vmem:[#allocation7 + $0x4] sm:$0xf]
    %v183 = vld [vmem:[#allocation7 + $0x8] sm:$0xf]
    %v184 = vld [vmem:[#allocation7 + $0xc] sm:$0xf]
    %v185 = vld [vmem:[#allocation7 + $0x10] sm:$0xf]
    %v186 = vld [vmem:[#allocation7 + $0x14] sm:$0xf]
    %v187 = vld [vmem:[#allocation7 + $0x18] sm:$0xf]
    %v188 = vld [vmem:[#allocation7 + $0x1c] sm:$0xf]
    %v189 = vld [vmem:[#allocation7 + $0x20] sm:$0xf]
    %v190 = vld [vmem:[#allocation7 + $0x24] sm:$0xf]
    %v191 = vld [vmem:[#allocation7 + $0x28] sm:$0xf]
    %v192 = vld [vmem:[#allocation7 + $0x2c] sm:$0xf]
    %v193 = vld [vmem:[#allocation7 + $0x30] sm:$0xf]
    %v194 = vld [vmem:[#allocation7 + $0x34] sm:$0xf]
    %v195 = vld [vmem:[#allocation7 + $0x38] sm:$0xf]
    %v196 = vld [vmem:[#allocation7 + $0x3c] sm:$0xf]
    %v197 = vld [vmem:[#allocation7 + $0x40] sm:$0xf]
    %v198 = vld [vmem:[#allocation7 + $0x44] sm:$0xf]
    %v199 = vld [vmem:[#allocation7 + $0x48] sm:$0xf]
    %v200 = vld [vmem:[#allocation7 + $0x4c] sm:$0xf]
    %v201 = vld [vmem:[#allocation7 + $0x50] sm:$0xf]
    %v202 = vld [vmem:[#allocation7 + $0x54] sm:$0xf]
    %v203 = vld [vmem:[#allocation7 + $0x58] sm:$0xf]
    %v204 = vld [vmem:[#allocation7 + $0x5c] sm:$0xf]
    %v205 = vld [vmem:[#allocation7 + $0x60] sm:$0xf]
    %v206 = vld [vmem:[#allocation7 + $0x64] sm:$0xf]
    %v207 = vld [vmem:[#allocation7 + $0x68] sm:$0xf]
    %v208 = vld [vmem:[#allocation7 + $0x6c] sm:$0xf]
    %v209 = vld [vmem:[#allocation7 + $0x70] sm:$0xf]
    %v210 = vld [vmem:[#allocation7 + $0x74] sm:$0xf]
    %v211 = vld [vmem:[#allocation7 + $0x78] sm:$0xf]
    %v212 = vld [vmem:[#allocation7 + $0x7c] sm:$0xf]
    %v213 = vld [vmem:[#allocation7 + $0x80] sm:$0xf]
    %v214 = vld [vmem:[#allocation7 + $0x84] sm:$0xf]
    %v215 = vld [vmem:[#allocation7 + $0x88] sm:$0xf]
    %v216 = vld [vmem:[#allocation7 + $0x8c] sm:$0xf]
    %v217 = vld [vmem:[#allocation7 + $0x90] sm:$0xf]
    %v218 = vld [vmem:[#allocation7 + $0x94] sm:$0xf]
    %v219 = vld [vmem:[#allocation7 + $0x98] sm:$0xf]
    %v220 = vld [vmem:[#allocation7 + $0x9c] sm:$0xf]
    %v221 = vld [vmem:[#allocation7 + $0xa0] sm:$0xf]
    %v222 = vld [vmem:[#allocation7 + $0xa4] sm:$0xf]
    %v223 = vld [vmem:[#allocation7 + $0xa8] sm:$0xf]
    %v224 = vld [vmem:[#allocation7 + $0xac] sm:$0xf]
    %v225 = vld [vmem:[#allocation7 + $0xb0] sm:$0xf]
    %v226 = vld [vmem:[#allocation7 + $0xb4] sm:$0xf]
    %v227 = vld [vmem:[#allocation7 + $0xb8] sm:$0xf]
    %v228 = vld [vmem:[#allocation7 + $0xbc] sm:$0xf]
    %v229 = vld [vmem:[#allocation7 + $0xc0] sm:$0xf]
    %v230 = vld [vmem:[#allocation7 + $0xc4] sm:$0xf]
    %v231 = vld [vmem:[#allocation7 + $0xc8] sm:$0xf]
    %v232 = vld [vmem:[#allocation7 + $0xcc] sm:$0xf]
    %v233 = vld [vmem:[#allocation7 + $0xd0] sm:$0xf]
    %v234 = vld [vmem:[#allocation7 + $0xd4] sm:$0xf]
    %v235 = vld [vmem:[#allocation7 + $0xd8] sm:$0xf]
    %v236 = vld [vmem:[#allocation7 + $0xdc] sm:$0xf]
    %v237 = vld [vmem:[#allocation7 + $0xe0] sm:$0xf]
    %v238 = vld [vmem:[#allocation7 + $0xe4] sm:$0xf]
    %v239 = vld [vmem:[#allocation7 + $0xe8] sm:$0xf]
    %v240 = vld [vmem:[#allocation7 + $0xec] sm:$0xf]
    %v241 = vld [vmem:[#allocation7 + $0xf0] sm:$0xf]
    %v242 = vld [vmem:[#allocation7 + $0xf4] sm:$0xf]
    %v243 = vld [vmem:[#allocation7 + $0xf8] sm:$0xf]
    %v244 = vld [vmem:[#allocation7 + $0xfc] sm:$0xf]
    %v245 = vld [vmem:[#allocation7 + $0x100] sm:$0xf]
    %v246 = vld [vmem:[#allocation7 + $0x104] sm:$0xf]
    %v247 = vld [vmem:[#allocation7 + $0x108] sm:$0xf]
    %v248 = vld [vmem:[#allocation7 + $0x10c] sm:$0xf]
    %v249 = vld [vmem:[#allocation7 + $0x110] sm:$0xf]
    %v250 = vld [vmem:[#allocation7 + $0x114] sm:$0xf]
    %v251 = vld [vmem:[#allocation7 + $0x118] sm:$0xf]
    %v252 = vld [vmem:[#allocation7 + $0x11c] sm:$0xf]
    %v253 = vld [vmem:[#allocation7 + $0x120] sm:$0xf]
    %v254 = vld [vmem:[#allocation7 + $0x124] sm:$0xf]
    %v255 = vld [vmem:[#allocation7 + $0x128] sm:$0xf]
    %v256 = vld [vmem:[#allocation7 + $0x12c] sm:$0xf]
    %v257 = vld [vmem:[#allocation7 + $0x130] sm:$0xf]
    %v258 = vld [vmem:[#allocation7 + $0x134] sm:$0xf]
    %v259 = vld [vmem:[#allocation7 + $0x138] sm:$0xf]
    %v260 = vld [vmem:[#allocation7 + $0x13c] sm:$0xf]
    %v261 = vld [vmem:[#allocation7 + $0x140] sm:$0xf]
    %v262 = vld [vmem:[#allocation7 + $0x144] sm:$0xf]
    %v263 = vld [vmem:[#allocation7 + $0x148] sm:$0xf]
    %v264 = vld [vmem:[#allocation7 + $0x14c] sm:$0xf]
    %v265 = vld [vmem:[#allocation7 + $0x150] sm:$0xf]
    %v266 = vld [vmem:[#allocation7 + $0x154] sm:$0xf]
    %v267 = vld [vmem:[#allocation7 + $0x158] sm:$0xf]
    %v268 = vld [vmem:[#allocation7 + $0x15c] sm:$0xf]
    %v269 = vld [vmem:[#allocation7 + $0x160] sm:$0xf]
    %v270 = vld [vmem:[#allocation7 + $0x164] sm:$0xf]
    %v271 = vld [vmem:[#allocation7 + $0x168] sm:$0xf]
    %v272 = vld [vmem:[#allocation7 + $0x16c] sm:$0xf]
    %v273 = vld [vmem:[#allocation7 + $0x170] sm:$0xf]
    %v274 = vld [vmem:[#allocation7 + $0x174] sm:$0xf]
    %v275 = vld [vmem:[#allocation7 + $0x178] sm:$0xf]
    %v276 = vld [vmem:[#allocation7 + $0x17c] sm:$0xf]
    %v277 = vld [vmem:[#allocation7 + $0x180] sm:$0xf]
    %v278 = vld [vmem:[#allocation7 + $0x184] sm:$0xf]
    %v279 = vld [vmem:[#allocation7 + $0x188] sm:$0xf]
    %v280 = vld [vmem:[#allocation7 + $0x18c] sm:$0xf]
    %v281 = vld [vmem:[#allocation7 + $0x190] sm:$0xf]
    %v282 = vld [vmem:[#allocation7 + $0x194] sm:$0xf]
    %v283 = vld [vmem:[#allocation7 + $0x198] sm:$0xf]
    %v284 = vld [vmem:[#allocation7 + $0x19c] sm:$0xf]
    %v285 = vld [vmem:[#allocation7 + $0x1a0] sm:$0xf]
    %v286 = vld [vmem:[#allocation7 + $0x1a4] sm:$0xf]
    %v287 = vld [vmem:[#allocation7 + $0x1a8] sm:$0xf]
    %v288 = vld [vmem:[#allocation7 + $0x1ac] sm:$0xf]
    %v289 = vld [vmem:[#allocation7 + $0x1b0] sm:$0xf]
    %v290 = vld [vmem:[#allocation7 + $0x1b4] sm:$0xf]
    %v291 = vld [vmem:[#allocation7 + $0x1b8] sm:$0xf]
    %v292 = vld [vmem:[#allocation7 + $0x1bc] sm:$0xf]
    %v293 = vld [vmem:[#allocation7 + $0x1c0] sm:$0xf]
    %v294 = vld [vmem:[#allocation7 + $0x1c4] sm:$0xf]
    %v295 = vld [vmem:[#allocation7 + $0x1c8] sm:$0xf]
    %v296 = vld [vmem:[#allocation7 + $0x1cc] sm:$0xf]
    %v297 = vld [vmem:[#allocation7 + $0x1d0] sm:$0xf]
    %v298 = vld [vmem:[#allocation7 + $0x1d4] sm:$0xf]
    %v299 = vld [vmem:[#allocation7 + $0x1d8] sm:$0xf]
    %v300 = vld [vmem:[#allocation7 + $0x1dc] sm:$0xf]
    %v301 = vld [vmem:[#allocation7 + $0x1e0] sm:$0xf]
    %v302 = vld [vmem:[#allocation7 + $0x1e4] sm:$0xf]
    %v303 = vld [vmem:[#allocation7 + $0x1e8] sm:$0xf]
    %v304 = vld [vmem:[#allocation7 + $0x1ec] sm:$0xf]
    %v305 = vld [vmem:[#allocation7 + $0x1f0] sm:$0xf]
    %v306 = vld [vmem:[#allocation7 + $0x1f4] sm:$0xf]
    %v307 = vld [vmem:[#allocation7 + $0x1f8] sm:$0xf]
    %v308 = vld [vmem:[#allocation7 + $0x1fc] sm:$0xf]
    %v309 = vld [vmem:[#allocation8] sm:$0x1]
    %v311 = vperm.slane %v309, 0
    %v321 = vunpack.c.l.b16 %v173
    %v322 = vunpack.c.h.b16 %v173
    %v323 = vunpack.c.l.b16 %v174
    %v324 = vunpack.c.h.b16 %v174
    %v325 = vunpack.c.l.b16 %v175
    %v326 = vunpack.c.h.b16 %v175
    %v327 = vunpack.c.l.b16 %v176
    %v328 = vunpack.c.h.b16 %v176
    %v329 = vunpack.c.l.b16 %v177
    %v330 = vunpack.c.h.b16 %v177
    %v331 = vunpack.c.l.b16 %v178
    %v332 = vunpack.c.h.b16 %v178
    %v333 = vunpack.c.l.b16 %v179
    %v334 = vunpack.c.h.b16 %v179
    %v335 = vunpack.c.l.b16 %v180
    %v336 = vunpack.c.h.b16 %v180
    %v337 = vpack.c.b16 %v329, %v321
    %v338 = vpack.c.b16 %v330, %v322
    %v339 = vpack.c.b16 %v331, %v323
    %v340 = vpack.c.b16 %v332, %v324
    %v341 = vpack.c.b16 %v333, %v325
    %v342 = vpack.c.b16 %v334, %v326
    %v343 = vpack.c.b16 %v335, %v327
    %v344 = vpack.c.b16 %v336, %v328
    %v481 = vunpack.c.l.b16 %v181
    %v482 = vunpack.c.l.b16 %v182
    %v483 = vunpack.c.l.b16 %v183
    %v484 = vunpack.c.l.b16 %v184
    %v485 = vunpack.c.l.b16 %v185
    %v486 = vunpack.c.l.b16 %v186
    %v487 = vunpack.c.l.b16 %v187
    %v488 = vunpack.c.l.b16 %v188
    %v489 = vunpack.c.l.b16 %v189
    %v490 = vunpack.c.l.b16 %v190
    %v491 = vunpack.c.l.b16 %v191
    %v492 = vunpack.c.l.b16 %v192
    %v493 = vunpack.c.l.b16 %v193
    %v494 = vunpack.c.l.b16 %v194
    %v495 = vunpack.c.l.b16 %v195
    %v496 = vunpack.c.l.b16 %v196
    %v497 = vunpack.c.l.b16 %v197
    %v498 = vunpack.c.l.b16 %v198
    %v499 = vunpack.c.l.b16 %v199
    %v500 = vunpack.c.l.b16 %v200
    %v501 = vunpack.c.l.b16 %v201
    %v502 = vunpack.c.l.b16 %v202
    %v503 = vunpack.c.l.b16 %v203
    %v504 = vunpack.c.l.b16 %v204
    %v505 = vunpack.c.l.b16 %v205
    %v506 = vunpack.c.l.b16 %v206
    %v507 = vunpack.c.l.b16 %v207
    %v508 = vunpack.c.l.b16 %v208
    %v509 = vunpack.c.l.b16 %v209
    %v510 = vunpack.c.l.b16 %v210
    %v511 = vunpack.c.l.b16 %v211
    %v512 = vunpack.c.l.b16 %v212
    %v513 = vunpack.c.l.b16 %v213
    %v514 = vunpack.c.l.b16 %v214
    %v515 = vunpack.c.l.b16 %v215
    %v516 = vunpack.c.l.b16 %v216
    %v517 = vunpack.c.l.b16 %v217
    %v518 = vunpack.c.l.b16 %v218
    %v519 = vunpack.c.l.b16 %v219
    %v520 = vunpack.c.l.b16 %v220
    %v521 = vunpack.c.l.b16 %v221
    %v522 = vunpack.c.l.b16 %v222
    %v523 = vunpack.c.l.b16 %v223
    %v524 = vunpack.c.l.b16 %v224
    %v525 = vunpack.c.l.b16 %v225
    %v526 = vunpack.c.l.b16 %v226
    %v527 = vunpack.c.l.b16 %v227
    %v528 = vunpack.c.l.b16 %v228
    %v529 = vunpack.c.l.b16 %v229
    %v530 = vunpack.c.l.b16 %v230
    %v531 = vunpack.c.l.b16 %v231
    %v532 = vunpack.c.l.b16 %v232
    %v533 = vunpack.c.l.b16 %v233
    %v534 = vunpack.c.l.b16 %v234
    %v535 = vunpack.c.l.b16 %v235
    %v536 = vunpack.c.l.b16 %v236
    %v537 = vunpack.c.l.b16 %v237
    %v538 = vunpack.c.l.b16 %v238
    %v539 = vunpack.c.l.b16 %v239
    %v540 = vunpack.c.l.b16 %v240
    %v541 = vunpack.c.l.b16 %v241
    %v542 = vunpack.c.l.b16 %v242
    %v543 = vunpack.c.l.b16 %v243
    %v544 = vunpack.c.l.b16 %v244
    %v545 = vunpack.c.l.b16 %v245
    %v546 = vunpack.c.l.b16 %v246
    %v547 = vunpack.c.l.b16 %v247
    %v548 = vunpack.c.l.b16 %v248
    %v549 = vunpack.c.l.b16 %v249
    %v550 = vunpack.c.l.b16 %v250
    %v551 = vunpack.c.l.b16 %v251
    %v552 = vunpack.c.l.b16 %v252
    %v553 = vunpack.c.l.b16 %v253
    %v554 = vunpack.c.l.b16 %v254
    %v555 = vunpack.c.l.b16 %v255
    %v556 = vunpack.c.l.b16 %v256
    %v557 = vunpack.c.l.b16 %v257
    %v558 = vunpack.c.l.b16 %v258
    %v559 = vunpack.c.l.b16 %v259
    %v560 = vunpack.c.l.b16 %v260
    %v561 = vunpack.c.l.b16 %v261
    %v562 = vunpack.c.l.b16 %v262
    %v563 = vunpack.c.l.b16 %v263
    %v564 = vunpack.c.l.b16 %v264
    %v565 = vunpack.c.l.b16 %v265
    %v566 = vunpack.c.l.b16 %v266
    %v567 = vunpack.c.l.b16 %v267
    %v568 = vunpack.c.l.b16 %v268
    %v569 = vunpack.c.l.b16 %v269
    %v570 = vunpack.c.l.b16 %v270
    %v571 = vunpack.c.l.b16 %v271
    %v572 = vunpack.c.l.b16 %v272
    %v573 = vunpack.c.l.b16 %v273
    %v574 = vunpack.c.l.b16 %v274
    %v575 = vunpack.c.l.b16 %v275
    %v576 = vunpack.c.l.b16 %v276
    %v577 = vunpack.c.l.b16 %v277
    %v578 = vunpack.c.l.b16 %v278
    %v579 = vunpack.c.l.b16 %v279
    %v580 = vunpack.c.l.b16 %v280
    %v581 = vunpack.c.l.b16 %v281
    %v582 = vunpack.c.l.b16 %v282
    %v583 = vunpack.c.l.b16 %v283
    %v584 = vunpack.c.l.b16 %v284
    %v585 = vunpack.c.l.b16 %v285
    %v586 = vunpack.c.l.b16 %v286
    %v587 = vunpack.c.l.b16 %v287
    %v588 = vunpack.c.l.b16 %v288
    %v589 = vunpack.c.l.b16 %v289
    %v590 = vunpack.c.l.b16 %v290
    %v591 = vunpack.c.l.b16 %v291
    %v592 = vunpack.c.l.b16 %v292
    %v593 = vunpack.c.l.b16 %v293
    %v594 = vunpack.c.l.b16 %v294
    %v595 = vunpack.c.l.b16 %v295
    %v596 = vunpack.c.l.b16 %v296
    %v597 = vunpack.c.l.b16 %v297
    %v598 = vunpack.c.l.b16 %v298
    %v599 = vunpack.c.l.b16 %v299
    %v600 = vunpack.c.l.b16 %v300
    %v601 = vunpack.c.l.b16 %v301
    %v602 = vunpack.c.l.b16 %v302
    %v603 = vunpack.c.l.b16 %v303
    %v604 = vunpack.c.l.b16 %v304
    %v605 = vunpack.c.l.b16 %v305
    %v606 = vunpack.c.l.b16 %v306
    %v607 = vunpack.c.l.b16 %v307
    %v608 = vunpack.c.l.b16 %v308
    %v609 = vpack.c.b16 %v482, %v481
    %v610 = vpack.c.b16 %v484, %v483
    %v611 = vpack.c.b16 %v486, %v485
    %v612 = vpack.c.b16 %v488, %v487
    %v613 = vpack.c.b16 %v490, %v489
    %v614 = vpack.c.b16 %v492, %v491
    %v615 = vpack.c.b16 %v494, %v493
    %v616 = vpack.c.b16 %v496, %v495
    %v617 = vpack.c.b16 %v498, %v497
    %v618 = vpack.c.b16 %v500, %v499
    %v619 = vpack.c.b16 %v502, %v501
    %v620 = vpack.c.b16 %v504, %v503
    %v621 = vpack.c.b16 %v506, %v505
    %v622 = vpack.c.b16 %v508, %v507
    %v623 = vpack.c.b16 %v510, %v509
    %v624 = vpack.c.b16 %v512, %v511
    %v625 = vpack.c.b16 %v514, %v513
    %v626 = vpack.c.b16 %v516, %v515
    %v627 = vpack.c.b16 %v518, %v517
    %v628 = vpack.c.b16 %v520, %v519
    %v629 = vpack.c.b16 %v522, %v521
    %v630 = vpack.c.b16 %v524, %v523
    %v631 = vpack.c.b16 %v526, %v525
    %v632 = vpack.c.b16 %v528, %v527
    %v633 = vpack.c.b16 %v530, %v529
    %v634 = vpack.c.b16 %v532, %v531
    %v635 = vpack.c.b16 %v534, %v533
    %v636 = vpack.c.b16 %v536, %v535
    %v637 = vpack.c.b16 %v538, %v537
    %v638 = vpack.c.b16 %v540, %v539
    %v639 = vpack.c.b16 %v542, %v541
    %v640 = vpack.c.b16 %v544, %v543
    %v641 = vpack.c.b16 %v546, %v545
    %v642 = vpack.c.b16 %v548, %v547
    %v643 = vpack.c.b16 %v550, %v549
    %v644 = vpack.c.b16 %v552, %v551
    %v645 = vpack.c.b16 %v554, %v553
    %v646 = vpack.c.b16 %v556, %v555
    %v647 = vpack.c.b16 %v558, %v557
    %v648 = vpack.c.b16 %v560, %v559
    %v649 = vpack.c.b16 %v562, %v561
    %v650 = vpack.c.b16 %v564, %v563
    %v651 = vpack.c.b16 %v566, %v565
    %v652 = vpack.c.b16 %v568, %v567
    %v653 = vpack.c.b16 %v570, %v569
    %v654 = vpack.c.b16 %v572, %v571
    %v655 = vpack.c.b16 %v574, %v573
    %v656 = vpack.c.b16 %v576, %v575
    %v657 = vpack.c.b16 %v578, %v577
    %v658 = vpack.c.b16 %v580, %v579
    %v659 = vpack.c.b16 %v582, %v581
    %v660 = vpack.c.b16 %v584, %v583
    %v661 = vpack.c.b16 %v586, %v585
    %v662 = vpack.c.b16 %v588, %v587
    %v663 = vpack.c.b16 %v590, %v589
    %v664 = vpack.c.b16 %v592, %v591
    %v665 = vpack.c.b16 %v594, %v593
    %v666 = vpack.c.b16 %v596, %v595
    %v667 = vpack.c.b16 %v598, %v597
    %v668 = vpack.c.b16 %v600, %v599
    %v669 = vpack.c.b16 %v602, %v601
    %v670 = vpack.c.b16 %v604, %v603
    %v671 = vpack.c.b16 %v606, %v605
    %v672 = vpack.c.b16 %v608, %v607
    %737 = vmatpush.bf16.msra.mxu0 %v616
    %738 = vmatpush.bf16.msra.mxu0 %v615
    %739 = vmatpush.bf16.msra.mxu0 %v614
    %740 = vmatpush.bf16.msra.mxu0 %v613
    %741 = vmatpush.bf16.msra.mxu0 %v612
    %742 = vmatpush.bf16.msra.mxu0 %v611
    %743 = vmatpush.bf16.msra.mxu0 %v610
    %744 = vmatpush.bf16.msra.mxu0 %v609
    %745 = vmatmul.bf16.gmra.mxu0 %v337
    %v746 = vpop.f32.mrf.mxu0
    %v747 = vadd.f32 %v311, %v746
    %v748 = vpop.f32.mrf.mxu0
    %v749 = vadd.f32 %v311, %v748
    %750 = vdwg.mxu0
    %751 = vmatpush.bf16.msra.mxu0 %v624
    %752 = vmatpush.bf16.msra.mxu0 %v623
    %753 = vmatpush.bf16.msra.mxu0 %v622
    %754 = vmatpush.bf16.msra.mxu0 %v621
    %755 = vmatpush.bf16.msra.mxu0 %v620
    %756 = vmatpush.bf16.msra.mxu0 %v619
    %757 = vmatpush.bf16.msra.mxu0 %v618
    %758 = vmatpush.bf16.msra.mxu0 %v617
    %759 = vmatmul.bf16.gmra.mxu0 %v338
    %v760 = vpop.f32.mrf.mxu0
    %v761 = vadd.f32 %v747, %v760
    %v762 = vpop.f32.mrf.mxu0
    %v763 = vadd.f32 %v749, %v762
    %764 = vdwg.mxu0
    %765 = vmatpush.bf16.msra.mxu0 %v632
    %766 = vmatpush.bf16.msra.mxu0 %v631
    %767 = vmatpush.bf16.msra.mxu0 %v630
    %768 = vmatpush.bf16.msra.mxu0 %v629
    %769 = vmatpush.bf16.msra.mxu0 %v628
    %770 = vmatpush.bf16.msra.mxu0 %v627
    %771 = vmatpush.bf16.msra.mxu0 %v626
    %772 = vmatpush.bf16.msra.mxu0 %v625
    %773 = vmatmul.bf16.gmra.mxu0 %v339
    %v774 = vpop.f32.mrf.mxu0
    %v775 = vadd.f32 %v761, %v774
    %v776 = vpop.f32.mrf.mxu0
    %v777 = vadd.f32 %v763, %v776
    %778 = vdwg.mxu0
    %779 = vmatpush.bf16.msra.mxu0 %v640
    %780 = vmatpush.bf16.msra.mxu0 %v639
    %781 = vmatpush.bf16.msra.mxu0 %v638
    %782 = vmatpush.bf16.msra.mxu0 %v637
    %783 = vmatpush.bf16.msra.mxu0 %v636
    %784 = vmatpush.bf16.msra.mxu0 %v635
    %785 = vmatpush.bf16.msra.mxu0 %v634
    %786 = vmatpush.bf16.msra.mxu0 %v633
    %787 = vmatmul.bf16.gmra.mxu0 %v340
    %v788 = vpop.f32.mrf.mxu0
    %v789 = vadd.f32 %v775, %v788
    %v790 = vpop.f32.mrf.mxu0
    %v791 = vadd.f32 %v777, %v790
    %792 = vdwg.mxu0
    %793 = vmatpush.bf16.msra.mxu0 %v648
    %794 = vmatpush.bf16.msra.mxu0 %v647
    %795 = vmatpush.bf16.msra.mxu0 %v646
    %796 = vmatpush.bf16.msra.mxu0 %v645
    %797 = vmatpush.bf16.msra.mxu0 %v644
    %798 = vmatpush.bf16.msra.mxu0 %v643
    %799 = vmatpush.bf16.msra.mxu0 %v642
    %800 = vmatpush.bf16.msra.mxu0 %v641
    %801 = vmatmul.bf16.gmra.mxu0 %v341
    %v802 = vpop.f32.mrf.mxu0
    %v803 = vadd.f32 %v789, %v802
    %v804 = vpop.f32.mrf.mxu0
    %v805 = vadd.f32 %v791, %v804
    %806 = vdwg.mxu0
    %807 = vmatpush.bf16.msra.mxu0 %v656
    %808 = vmatpush.bf16.msra.mxu0 %v655
    %809 = vmatpush.bf16.msra.mxu0 %v654
    %810 = vmatpush.bf16.msra.mxu0 %v653
    %811 = vmatpush.bf16.msra.mxu0 %v652
    %812 = vmatpush.bf16.msra.mxu0 %v651
    %813 = vmatpush.bf16.msra.mxu0 %v650
    %814 = vmatpush.bf16.msra.mxu0 %v649
    %815 = vmatmul.bf16.gmra.mxu0 %v342
    %v816 = vpop.f32.mrf.mxu0
    %v817 = vadd.f32 %v803, %v816
    %v818 = vpop.f32.mrf.mxu0
    %v819 = vadd.f32 %v805, %v818
    %820 = vdwg.mxu0
    %821 = vmatpush.bf16.msra.mxu0 %v664
    %822 = vmatpush.bf16.msra.mxu0 %v663
    %823 = vmatpush.bf16.msra.mxu0 %v662
    %824 = vmatpush.bf16.msra.mxu0 %v661
    %825 = vmatpush.bf16.msra.mxu0 %v660
    %826 = vmatpush.bf16.msra.mxu0 %v659
    %827 = vmatpush.bf16.msra.mxu0 %v658
    %828 = vmatpush.bf16.msra.mxu0 %v657
    %829 = vmatmul.bf16.gmra.mxu0 %v343
    %v830 = vpop.f32.mrf.mxu0
    %v831 = vadd.f32 %v817, %v830
    %v832 = vpop.f32.mrf.mxu0
    %v833 = vadd.f32 %v819, %v832
    %834 = vdwg.mxu0
    %835 = vmatpush.bf16.msra.mxu0 %v672
    %836 = vmatpush.bf16.msra.mxu0 %v671
    %837 = vmatpush.bf16.msra.mxu0 %v670
    %838 = vmatpush.bf16.msra.mxu0 %v669
    %839 = vmatpush.bf16.msra.mxu0 %v668
    %840 = vmatpush.bf16.msra.mxu0 %v667
    %841 = vmatpush.bf16.msra.mxu0 %v666
    %842 = vmatpush.bf16.msra.mxu0 %v665
    %843 = vmatmul.bf16.gmra.mxu0 %v344
    %v844 = vpop.f32.mrf.mxu0
    %v845 = vadd.f32 %v831, %v844
    %v846 = vpop.f32.mrf.mxu0
    %v847 = vadd.f32 %v833, %v846
    %848 = vdwg.mxu0
    %v849 = vmax.f32 %v845, 0.0
    %v850 = vmax.f32 %v847, 0.0
    %v851 = vpack.c.bf16 %v850, %v849
    %v852 = vld [vmem:[#allocation10] sm:$0xff]
    %v853 = vld [vmem:[#allocation10 + $0x8] sm:$0xff]
    %v854 = vld [vmem:[#allocation10 + $0x10] sm:$0xff]
    %v855 = vld [vmem:[#allocation10 + $0x18] sm:$0xff]
    %v856 = vld [vmem:[#allocation10 + $0x20] sm:$0xff]
    %v857 = vld [vmem:[#allocation10 + $0x28] sm:$0xff]
    %v858 = vld [vmem:[#allocation10 + $0x30] sm:$0xff]
    %v859 = vld [vmem:[#allocation10 + $0x38] sm:$0xff]
    %v860 = vld [vmem:[#allocation10 + $0x40] sm:$0xff]
    %v861 = vld [vmem:[#allocation10 + $0x48] sm:$0xff]
    %v862 = vld [vmem:[#allocation10 + $0x50] sm:$0xff]
    %v863 = vld [vmem:[#allocation10 + $0x58] sm:$0xff]
    %v864 = vld [vmem:[#allocation10 + $0x60] sm:$0xff]
    %v865 = vld [vmem:[#allocation10 + $0x68] sm:$0xff]
    %v866 = vld [vmem:[#allocation10 + $0x70] sm:$0xff]
    %v867 = vld [vmem:[#allocation10 + $0x78] sm:$0xff]
    %v868 = vld [vmem:[#allocation11] sm:$0x3]
    %v870 = vperm.slane %v868, 0
    %v871 = vperm.slane %v868, 1
    %v890 = vunpack.c.l.b16 %v852
    %v891 = vunpack.c.h.b16 %v852
    %v892 = vunpack.c.l.b16 %v853
    %v893 = vunpack.c.h.b16 %v853
    %v894 = vunpack.c.l.b16 %v854
    %v895 = vunpack.c.h.b16 %v854
    %v896 = vunpack.c.l.b16 %v855
    %v897 = vunpack.c.h.b16 %v855
    %v898 = vunpack.c.l.b16 %v856
    %v899 = vunpack.c.h.b16 %v856
    %v900 = vunpack.c.l.b16 %v857
    %v901 = vunpack.c.h.b16 %v857
    %v902 = vunpack.c.l.b16 %v858
    %v903 = vunpack.c.h.b16 %v858
    %v904 = vunpack.c.l.b16 %v859
    %v905 = vunpack.c.h.b16 %v859
    %v906 = vunpack.c.l.b16 %v860
    %v907 = vunpack.c.h.b16 %v860
    %v908 = vunpack.c.l.b16 %v861
    %v909 = vunpack.c.h.b16 %v861
    %v910 = vunpack.c.l.b16 %v862
    %v911 = vunpack.c.h.b16 %v862
    %v912 = vunpack.c.l.b16 %v863
    %v913 = vunpack.c.h.b16 %v863
    %v914 = vunpack.c.l.b16 %v864
    %v915 = vunpack.c.h.b16 %v864
    %v916 = vunpack.c.l.b16 %v865
    %v917 = vunpack.c.h.b16 %v865
    %v918 = vunpack.c.l.b16 %v866
    %v919 = vunpack.c.h.b16 %v866
    %v920 = vunpack.c.l.b16 %v867
    %v921 = vunpack.c.h.b16 %v867
    %v922 = vpack.c.b16 %v892, %v890
    %v923 = vpack.c.b16 %v893, %v891
    %v924 = vpack.c.b16 %v896, %v894
    %v925 = vpack.c.b16 %v897, %v895
    %v926 = vpack.c.b16 %v900, %v898
    %v927 = vpack.c.b16 %v901, %v899
    %v928 = vpack.c.b16 %v904, %v902
    %v929 = vpack.c.b16 %v905, %v903
    %v930 = vpack.c.b16 %v908, %v906
    %v931 = vpack.c.b16 %v909, %v907
    %v932 = vpack.c.b16 %v912, %v910
    %v933 = vpack.c.b16 %v913, %v911
    %v934 = vpack.c.b16 %v916, %v914
    %v935 = vpack.c.b16 %v917, %v915
    %v936 = vpack.c.b16 %v920, %v918
    %v937 = vpack.c.b16 %v921, %v919
    %954 = vmatpush.bf16.msra.mxu0 %v936
    %955 = vmatpush.bf16.msra.mxu0 %v934
    %956 = vmatpush.bf16.msra.mxu0 %v932
    %957 = vmatpush.bf16.msra.mxu0 %v930
    %958 = vmatpush.bf16.msra.mxu0 %v928
    %959 = vmatpush.bf16.msra.mxu0 %v926
    %960 = vmatpush.bf16.msra.mxu0 %v924
    %961 = vmatpush.bf16.msra.mxu0 %v922
    %962 = vmatmul.bf16.gmra.mxu0 %v851
    %v963 = vpop.f32.mrf.mxu0
    %v964 = vadd.f32 %v870, %v963
    %v965 = vpop.f32.mrf.mxu0
    %v966 = vadd.f32 %v870, %v965
    %967 = vdwg.mxu0
    %968 = vmatpush.bf16.msra.mxu0 %v937
    %969 = vmatpush.bf16.msra.mxu0 %v935
    %970 = vmatpush.bf16.msra.mxu0 %v933
    %971 = vmatpush.bf16.msra.mxu0 %v931
    %972 = vmatpush.bf16.msra.mxu0 %v929
    %973 = vmatpush.bf16.msra.mxu0 %v927
    %974 = vmatpush.bf16.msra.mxu0 %v925
    %975 = vmatpush.bf16.msra.mxu0 %v923
    %976 = vmatmul.bf16.gmra.mxu0 %v851
    %v977 = vpop.f32.mrf.mxu0
    %v978 = vadd.f32 %v871, %v977
    %v979 = vpop.f32.mrf.mxu0
    %v980 = vadd.f32 %v871, %v979
    %981 = vdwg.mxu0
    %v982 = vmul.f32 %v978, 0.5
    %v983 = vmul.f32 %v980, 0.5
    %v984 = vmul.f32 %v982, 1.442695
    %v985 = vpow.pop %v984
    %v986 = vmul.f32 %v983, 1.442695
    %v987 = vpow.pop %v986
    %v988 = vld [vmem:[#allocation5] sm:$0xff]
    %v989 = vld [vmem:[#allocation5 + $0x8] sm:$0xff]
    %v990 = vmul.f32 %v988, %v985
    %v991 = vmul.f32 %v989, %v987
    %v992 = vadd.f32 %v964, %v990
    %v993 = vadd.f32 %v966, %v991
    %v994 = vpack.c.bf16 %v993, %v992
    %v995 = vld [vmem:[#allocation13] sm:$0xf]
    %v996 = vld [vmem:[#allocation13 + $0x4] sm:$0xf]
    %v997 = vld [vmem:[#allocation13 + $0x8] sm:$0xf]
    %v998 = vld [vmem:[#allocation13 + $0xc] sm:$0xf]
    %v999 = vld [vmem:[#allocation13 + $0x10] sm:$0xf]
    %v1000 = vld [vmem:[#allocation13 + $0x14] sm:$0xf]
    %v1001 = vld [vmem:[#allocation13 + $0x18] sm:$0xf]
    %v1002 = vld [vmem:[#allocation13 + $0x1c] sm:$0xf]
    %v1003 = vld [vmem:[#allocation13 + $0x20] sm:$0xf]
    %v1004 = vld [vmem:[#allocation13 + $0x24] sm:$0xf]
    %v1005 = vld [vmem:[#allocation13 + $0x28] sm:$0xf]
    %v1006 = vld [vmem:[#allocation13 + $0x2c] sm:$0xf]
    %v1007 = vld [vmem:[#allocation13 + $0x30] sm:$0xf]
    %v1008 = vld [vmem:[#allocation13 + $0x34] sm:$0xf]
    %v1009 = vld [vmem:[#allocation13 + $0x38] sm:$0xf]
    %v1010 = vld [vmem:[#allocation13 + $0x3c] sm:$0xf]
    %v1011 = vld [vmem:[#allocation14] sm:$0x1]
    %v1013 = vperm.slane %v1011, 0
    %v1031 = vunpack.c.l.b16 %v995
    %v1032 = vunpack.c.l.b16 %v996
    %v1033 = vunpack.c.l.b16 %v997
    %v1034 = vunpack.c.l.b16 %v998
    %v1035 = vunpack.c.l.b16 %v999
    %v1036 = vunpack.c.l.b16 %v1000
    %v1037 = vunpack.c.l.b16 %v1001
    %v1038 = vunpack.c.l.b16 %v1002
    %v1039 = vunpack.c.l.b16 %v1003
    %v1040 = vunpack.c.l.b16 %v1004
    %v1041 = vunpack.c.l.b16 %v1005
    %v1042 = vunpack.c.l.b16 %v1006
    %v1043 = vunpack.c.l.b16 %v1007
    %v1044 = vunpack.c.l.b16 %v1008
    %v1045 = vunpack.c.l.b16 %v1009
    %v1046 = vunpack.c.l.b16 %v1010
    %v1047 = vpack.c.b16 %v1032, %v1031
    %v1048 = vpack.c.b16 %v1034, %v1033
    %v1049 = vpack.c.b16 %v1036, %v1035
    %v1050 = vpack.c.b16 %v1038, %v1037
    %v1051 = vpack.c.b16 %v1040, %v1039
    %v1052 = vpack.c.b16 %v1042, %v1041
    %v1053 = vpack.c.b16 %v1044, %v1043
    %v1054 = vpack.c.b16 %v1046, %v1045
    %1063 = vmatpush.bf16.msra.mxu0 %v1054
    %1064 = vmatpush.bf16.msra.mxu0 %v1053
    %1065 = vmatpush.bf16.msra.mxu0 %v1052
    %1066 = vmatpush.bf16.msra.mxu0 %v1051
    %1067 = vmatpush.bf16.msra.mxu0 %v1050
    %1068 = vmatpush.bf16.msra.mxu0 %v1049
    %1069 = vmatpush.bf16.msra.mxu0 %v1048
    %1070 = vmatpush.bf16.msra.mxu0 %v1047
    %1071 = vmatmul.bf16.gmra.mxu0 %v994
    %v1072 = vpop.f32.mrf.mxu0
    %v1073 = vadd.f32 %v1013, %v1072
    %v1074 = vpop.f32.mrf.mxu0
    %v1075 = vadd.f32 %v1013, %v1074
    %1076 = vdwg.mxu0
    %v1077 = vmax.f32 %v1073, 0.0
    %v1078 = vmax.f32 %v1075, 0.0
    %v1079 = vpack.c.bf16 %v1078, %v1077
    %v1080 = vld [vmem:[#allocation16] sm:$0xff]
    %v1081 = vld [vmem:[#allocation16 + $0x8] sm:$0xff]
    %v1082 = vld [vmem:[#allocation16 + $0x10] sm:$0xff]
    %v1083 = vld [vmem:[#allocation16 + $0x18] sm:$0xff]
    %v1084 = vld [vmem:[#allocation16 + $0x20] sm:$0xff]
    %v1085 = vld [vmem:[#allocation16 + $0x28] sm:$0xff]
    %v1086 = vld [vmem:[#allocation16 + $0x30] sm:$0xff]
    %v1087 = vld [vmem:[#allocation16 + $0x38] sm:$0xff]
    %v1088 = vld [vmem:[#allocation16 + $0x40] sm:$0xff]
    %v1089 = vld [vmem:[#allocation16 + $0x48] sm:$0xff]
    %v1090 = vld [vmem:[#allocation16 + $0x50] sm:$0xff]
    %v1091 = vld [vmem:[#allocation16 + $0x58] sm:$0xff]
    %v1092 = vld [vmem:[#allocation16 + $0x60] sm:$0xff]
    %v1093 = vld [vmem:[#allocation16 + $0x68] sm:$0xff]
    %v1094 = vld [vmem:[#allocation16 + $0x70] sm:$0xff]
    %v1095 = vld [vmem:[#allocation16 + $0x78] sm:$0xff]
    %v1096 = vld [vmem:[#allocation16 + $0x80] sm:$0xff]
    %v1097 = vld [vmem:[#allocation16 + $0x88] sm:$0xff]
    %v1098 = vld [vmem:[#allocation16 + $0x90] sm:$0xff]
    %v1099 = vld [vmem:[#allocation16 + $0x98] sm:$0xff]
    %v1100 = vld [vmem:[#allocation16 + $0xa0] sm:$0xff]
    %v1101 = vld [vmem:[#allocation16 + $0xa8] sm:$0xff]
    %v1102 = vld [vmem:[#allocation16 + $0xb0] sm:$0xff]
    %v1103 = vld [vmem:[#allocation16 + $0xb8] sm:$0xff]
    %v1104 = vld [vmem:[#allocation16 + $0xc0] sm:$0xff]
    %v1105 = vld [vmem:[#allocation16 + $0xc8] sm:$0xff]
    %v1106 = vld [vmem:[#allocation16 + $0xd0] sm:$0xff]
    %v1107 = vld [vmem:[#allocation16 + $0xd8] sm:$0xff]
    %v1108 = vld [vmem:[#allocation16 + $0xe0] sm:$0xff]
    %v1109 = vld [vmem:[#allocation16 + $0xe8] sm:$0xff]
    %v1110 = vld [vmem:[#allocation16 + $0xf0] sm:$0xff]
    %v1111 = vld [vmem:[#allocation16 + $0xf8] sm:$0xff]
    %v1112 = vld [vmem:[#allocation16 + $0x100] sm:$0xff]
    %v1113 = vld [vmem:[#allocation16 + $0x108] sm:$0xff]
    %v1114 = vld [vmem:[#allocation16 + $0x110] sm:$0xff]
    %v1115 = vld [vmem:[#allocation16 + $0x118] sm:$0xff]
    %v1116 = vld [vmem:[#allocation16 + $0x120] sm:$0xff]
    %v1117 = vld [vmem:[#allocation16 + $0x128] sm:$0xff]
    %v1118 = vld [vmem:[#allocation16 + $0x130] sm:$0xff]
    %v1119 = vld [vmem:[#allocation16 + $0x138] sm:$0xff]
    %v1120 = vld [vmem:[#allocation16 + $0x140] sm:$0xff]
    %v1121 = vld [vmem:[#allocation16 + $0x148] sm:$0xff]
    %v1122 = vld [vmem:[#allocation16 + $0x150] sm:$0xff]
    %v1123 = vld [vmem:[#allocation16 + $0x158] sm:$0xff]
    %v1124 = vld [vmem:[#allocation16 + $0x160] sm:$0xff]
    %v1125 = vld [vmem:[#allocation16 + $0x168] sm:$0xff]
    %v1126 = vld [vmem:[#allocation16 + $0x170] sm:$0xff]
    %v1127 = vld [vmem:[#allocation16 + $0x178] sm:$0xff]
    %v1128 = vld [vmem:[#allocation16 + $0x180] sm:$0xff]
    %v1129 = vld [vmem:[#allocation16 + $0x188] sm:$0xff]
    %v1130 = vld [vmem:[#allocation16 + $0x190] sm:$0xff]
    %v1131 = vld [vmem:[#allocation16 + $0x198] sm:$0xff]
    %v1132 = vld [vmem:[#allocation16 + $0x1a0] sm:$0xff]
    %v1133 = vld [vmem:[#allocation16 + $0x1a8] sm:$0xff]
    %v1134 = vld [vmem:[#allocation16 + $0x1b0] sm:$0xff]
    %v1135 = vld [vmem:[#allocation16 + $0x1b8] sm:$0xff]
    %v1136 = vld [vmem:[#allocation16 + $0x1c0] sm:$0xff]
    %v1137 = vld [vmem:[#allocation16 + $0x1c8] sm:$0xff]
    %v1138 = vld [vmem:[#allocation16 + $0x1d0] sm:$0xff]
    %v1139 = vld [vmem:[#allocation16 + $0x1d8] sm:$0xff]
    %v1140 = vld [vmem:[#allocation16 + $0x1e0] sm:$0xff]
    %v1141 = vld [vmem:[#allocation16 + $0x1e8] sm:$0xff]
    %v1142 = vld [vmem:[#allocation16 + $0x1f0] sm:$0xff]
    %v1143 = vld [vmem:[#allocation16 + $0x1f8] sm:$0xff]
    %v1144 = vld [vmem:[%s9] sm:$0xff]
    %v1146 = vperm.slane %v1144, 0
    %v1147 = vperm.slane %v1144, 1
    %v1148 = vperm.slane %v1144, 2
    %v1149 = vperm.slane %v1144, 3
    %v1150 = vperm.slane %v1144, 4
    %v1151 = vperm.slane %v1144, 5
    %v1152 = vperm.slane %v1144, 6
    %v1153 = vperm.slane %v1144, 7
    %v1226 = vunpack.c.l.b16 %v1080
    %v1227 = vunpack.c.h.b16 %v1080
    %v1228 = vunpack.c.l.b16 %v1081
    %v1229 = vunpack.c.h.b16 %v1081
    %v1230 = vunpack.c.l.b16 %v1082
    %v1231 = vunpack.c.h.b16 %v1082
    %v1232 = vunpack.c.l.b16 %v1083
    %v1233 = vunpack.c.h.b16 %v1083
    %v1234 = vunpack.c.l.b16 %v1084
    %v1235 = vunpack.c.h.b16 %v1084
    %v1236 = vunpack.c.l.b16 %v1085
    %v1237 = vunpack.c.h.b16 %v1085
    %v1238 = vunpack.c.l.b16 %v1086
    %v1239 = vunpack.c.h.b16 %v1086
    %v1240 = vunpack.c.l.b16 %v1087
    %v1241 = vunpack.c.h.b16 %v1087
    %v1242 = vunpack.c.l.b16 %v1088
    %v1243 = vunpack.c.h.b16 %v1088
    %v1244 = vunpack.c.l.b16 %v1089
    %v1245 = vunpack.c.h.b16 %v1089
    %v1246 = vunpack.c.l.b16 %v1090
    %v1247 = vunpack.c.h.b16 %v1090
    %v1248 = vunpack.c.l.b16 %v1091
    %v1249 = vunpack.c.h.b16 %v1091
    %v1250 = vunpack.c.l.b16 %v1092
    %v1251 = vunpack.c.h.b16 %v1092
    %v1252 = vunpack.c.l.b16 %v1093
    %v1253 = vunpack.c.h.b16 %v1093
    %v1254 = vunpack.c.l.b16 %v1094
    %v1255 = vunpack.c.h.b16 %v1094
    %v1256 = vunpack.c.l.b16 %v1095
    %v1257 = vunpack.c.h.b16 %v1095
    %v1258 = vunpack.c.l.b16 %v1096
    %v1259 = vunpack.c.h.b16 %v1096
    %v1260 = vunpack.c.l.b16 %v1097
    %v1261 = vunpack.c.h.b16 %v1097
    %v1262 = vunpack.c.l.b16 %v1098
    %v1263 = vunpack.c.h.b16 %v1098
    %v1264 = vunpack.c.l.b16 %v1099
    %v1265 = vunpack.c.h.b16 %v1099
    %v1266 = vunpack.c.l.b16 %v1100
    %v1267 = vunpack.c.h.b16 %v1100
    %v1268 = vunpack.c.l.b16 %v1101
    %v1269 = vunpack.c.h.b16 %v1101
    %v1270 = vunpack.c.l.b16 %v1102
    %v1271 = vunpack.c.h.b16 %v1102
    %v1272 = vunpack.c.l.b16 %v1103
    %v1273 = vunpack.c.h.b16 %v1103
    %v1274 = vunpack.c.l.b16 %v1104
    %v1275 = vunpack.c.h.b16 %v1104
    %v1276 = vunpack.c.l.b16 %v1105
    %v1277 = vunpack.c.h.b16 %v1105
    %v1278 = vunpack.c.l.b16 %v1106
    %v1279 = vunpack.c.h.b16 %v1106
    %v1280 = vunpack.c.l.b16 %v1107
    %v1281 = vunpack.c.h.b16 %v1107
    %v1282 = vunpack.c.l.b16 %v1108
    %v1283 = vunpack.c.h.b16 %v1108
    %v1284 = vunpack.c.l.b16 %v1109
    %v1285 = vunpack.c.h.b16 %v1109
    %v1286 = vunpack.c.l.b16 %v1110
    %v1287 = vunpack.c.h.b16 %v1110
    %v1288 = vunpack.c.l.b16 %v1111
    %v1289 = vunpack.c.h.b16 %v1111
    %v1290 = vunpack.c.l.b16 %v1112
    %v1291 = vunpack.c.h.b16 %v1112
    %v1292 = vunpack.c.l.b16 %v1113
    %v1293 = vunpack.c.h.b16 %v1113
    %v1294 = vunpack.c.l.b16 %v1114
    %v1295 = vunpack.c.h.b16 %v1114
    %v1296 = vunpack.c.l.b16 %v1115
    %v1297 = vunpack.c.h.b16 %v1115
    %v1298 = vunpack.c.l.b16 %v1116
    %v1299 = vunpack.c.h.b16 %v1116
    %v1300 = vunpack.c.l.b16 %v1117
    %v1301 = vunpack.c.h.b16 %v1117
    %v1302 = vunpack.c.l.b16 %v1118
    %v1303 = vunpack.c.h.b16 %v1118
    %v1304 = vunpack.c.l.b16 %v1119
    %v1305 = vunpack.c.h.b16 %v1119
    %v1306 = vunpack.c.l.b16 %v1120
    %v1307 = vunpack.c.h.b16 %v1120
    %v1308 = vunpack.c.l.b16 %v1121
    %v1309 = vunpack.c.h.b16 %v1121
    %v1310 = vunpack.c.l.b16 %v1122
    %v1311 = vunpack.c.h.b16 %v1122
    %v1312 = vunpack.c.l.b16 %v1123
    %v1313 = vunpack.c.h.b16 %v1123
    %v1314 = vunpack.c.l.b16 %v1124
    %v1315 = vunpack.c.h.b16 %v1124
    %v1316 = vunpack.c.l.b16 %v1125
    %v1317 = vunpack.c.h.b16 %v1125
    %v1318 = vunpack.c.l.b16 %v1126
    %v1319 = vunpack.c.h.b16 %v1126
    %v1320 = vunpack.c.l.b16 %v1127
    %v1321 = vunpack.c.h.b16 %v1127
    %v1322 = vunpack.c.l.b16 %v1128
    %v1323 = vunpack.c.h.b16 %v1128
    %v1324 = vunpack.c.l.b16 %v1129
    %v1325 = vunpack.c.h.b16 %v1129
    %v1326 = vunpack.c.l.b16 %v1130
    %v1327 = vunpack.c.h.b16 %v1130
    %v1328 = vunpack.c.l.b16 %v1131
    %v1329 = vunpack.c.h.b16 %v1131
    %v1330 = vunpack.c.l.b16 %v1132
    %v1331 = vunpack.c.h.b16 %v1132
    %v1332 = vunpack.c.l.b16 %v1133
    %v1333 = vunpack.c.h.b16 %v1133
    %v1334 = vunpack.c.l.b16 %v1134
    %v1335 = vunpack.c.h.b16 %v1134
    %v1336 = vunpack.c.l.b16 %v1135
    %v1337 = vunpack.c.h.b16 %v1135
    %v1338 = vunpack.c.l.b16 %v1136
    %v1339 = vunpack.c.h.b16 %v1136
    %v1340 = vunpack.c.l.b16 %v1137
    %v1341 = vunpack.c.h.b16 %v1137
    %v1342 = vunpack.c.l.b16 %v1138
    %v1343 = vunpack.c.h.b16 %v1138
    %v1344 = vunpack.c.l.b16 %v1139
    %v1345 = vunpack.c.h.b16 %v1139
    %v1346 = vunpack.c.l.b16 %v1140
    %v1347 = vunpack.c.h.b16 %v1140
    %v1348 = vunpack.c.l.b16 %v1141
    %v1349 = vunpack.c.h.b16 %v1141
    %v1350 = vunpack.c.l.b16 %v1142
    %v1351 = vunpack.c.h.b16 %v1142
    %v1352 = vunpack.c.l.b16 %v1143
    %v1353 = vunpack.c.h.b16 %v1143
    %v1354 = vpack.c.b16 %v1234, %v1226
    %v1355 = vpack.c.b16 %v1235, %v1227
    %v1356 = vpack.c.b16 %v1236, %v1228
    %v1357 = vpack.c.b16 %v1237, %v1229
    %v1358 = vpack.c.b16 %v1238, %v1230
    %v1359 = vpack.c.b16 %v1239, %v1231
    %v1360 = vpack.c.b16 %v1240, %v1232
    %v1361 = vpack.c.b16 %v1241, %v1233
    %v1362 = vpack.c.b16 %v1250, %v1242
    %v1363 = vpack.c.b16 %v1251, %v1243
    %v1364 = vpack.c.b16 %v1252, %v1244
    %v1365 = vpack.c.b16 %v1253, %v1245
    %v1366 = vpack.c.b16 %v1254, %v1246
    %v1367 = vpack.c.b16 %v1255, %v1247
    %v1368 = vpack.c.b16 %v1256, %v1248
    %v1369 = vpack.c.b16 %v1257, %v1249
    %v1370 = vpack.c.b16 %v1266, %v1258
    %v1371 = vpack.c.b16 %v1267, %v1259
    %v1372 = vpack.c.b16 %v1268, %v1260
    %v1373 = vpack.c.b16 %v1269, %v1261
    %v1374 = vpack.c.b16 %v1270, %v1262
    %v1375 = vpack.c.b16 %v1271, %v1263
    %v1376 = vpack.c.b16 %v1272, %v1264
    %v1377 = vpack.c.b16 %v1273, %v1265
    %v1378 = vpack.c.b16 %v1282, %v1274
    %v1379 = vpack.c.b16 %v1283, %v1275
    %v1380 = vpack.c.b16 %v1284, %v1276
    %v1381 = vpack.c.b16 %v1285, %v1277
    %v1382 = vpack.c.b16 %v1286, %v1278
    %v1383 = vpack.c.b16 %v1287, %v1279
    %v1384 = vpack.c.b16 %v1288, %v1280
    %v1385 = vpack.c.b16 %v1289, %v1281
    %v1386 = vpack.c.b16 %v1298, %v1290
    %v1387 = vpack.c.b16 %v1299, %v1291
    %v1388 = vpack.c.b16 %v1300, %v1292
    %v1389 = vpack.c.b16 %v1301, %v1293
    %v1390 = vpack.c.b16 %v1302, %v1294
    %v1391 = vpack.c.b16 %v1303, %v1295
    %v1392 = vpack.c.b16 %v1304, %v1296
    %v1393 = vpack.c.b16 %v1305, %v1297
    %v1394 = vpack.c.b16 %v1314, %v1306
    %v1395 = vpack.c.b16 %v1315, %v1307
    %v1396 = vpack.c.b16 %v1316, %v1308
    %v1397 = vpack.c.b16 %v1317, %v1309
    %v1398 = vpack.c.b16 %v1318, %v1310
    %v1399 = vpack.c.b16 %v1319, %v1311
    %v1400 = vpack.c.b16 %v1320, %v1312
    %v1401 = vpack.c.b16 %v1321, %v1313
    %v1402 = vpack.c.b16 %v1330, %v1322
    %v1403 = vpack.c.b16 %v1331, %v1323
    %v1404 = vpack.c.b16 %v1332, %v1324
    %v1405 = vpack.c.b16 %v1333, %v1325
    %v1406 = vpack.c.b16 %v1334, %v1326
    %v1407 = vpack.c.b16 %v1335, %v1327
    %v1408 = vpack.c.b16 %v1336, %v1328
    %v1409 = vpack.c.b16 %v1337, %v1329
    %v1410 = vpack.c.b16 %v1346, %v1338
    %v1411 = vpack.c.b16 %v1347, %v1339
    %v1412 = vpack.c.b16 %v1348, %v1340
    %v1413 = vpack.c.b16 %v1349, %v1341
    %v1414 = vpack.c.b16 %v1350, %v1342
    %v1415 = vpack.c.b16 %v1351, %v1343
    %v1416 = vpack.c.b16 %v1352, %v1344
    %v1417 = vpack.c.b16 %v1353, %v1345
    %1482 = vmatpush.bf16.msra.mxu0 %v1410
    %1483 = vmatpush.bf16.msra.mxu0 %v1402
    %1484 = vmatpush.bf16.msra.mxu0 %v1394
    %1485 = vmatpush.bf16.msra.mxu0 %v1386
    %1486 = vmatpush.bf16.msra.mxu0 %v1378
    %1487 = vmatpush.bf16.msra.mxu0 %v1370
    %1488 = vmatpush.bf16.msra.mxu0 %v1362
    %1489 = vmatpush.bf16.msra.mxu0 %v1354
    %1490 = vmatmul.bf16.gmra.mxu0 %v1079
    %v1491 = vpop.f32.mrf.mxu0
    %v1492 = vadd.f32 %v1146, %v1491
    %v1493 = vpop.f32.mrf.mxu0
    %v1494 = vadd.f32 %v1146, %v1493
    %1495 = vdwg.mxu0
    %1496 = vmatpush.bf16.msra.mxu0 %v1411
    %1497 = vmatpush.bf16.msra.mxu0 %v1403
    %1498 = vmatpush.bf16.msra.mxu0 %v1395
    %1499 = vmatpush.bf16.msra.mxu0 %v1387
    %1500 = vmatpush.bf16.msra.mxu0 %v1379
    %1501 = vmatpush.bf16.msra.mxu0 %v1371
    %1502 = vmatpush.bf16.msra.mxu0 %v1363
    %1503 = vmatpush.bf16.msra.mxu0 %v1355
    %1504 = vmatmul.bf16.gmra.mxu0 %v1079
    %v1505 = vpop.f32.mrf.mxu0
    %v1506 = vadd.f32 %v1147, %v1505
    %v1507 = vpop.f32.mrf.mxu0
    %v1508 = vadd.f32 %v1147, %v1507
    %1509 = vdwg.mxu0
    %1510 = vmatpush.bf16.msra.mxu0 %v1412
    %1511 = vmatpush.bf16.msra.mxu0 %v1404
    %1512 = vmatpush.bf16.msra.mxu0 %v1396
    %1513 = vmatpush.bf16.msra.mxu0 %v1388
    %1514 = vmatpush.bf16.msra.mxu0 %v1380
    %1515 = vmatpush.bf16.msra.mxu0 %v1372
    %1516 = vmatpush.bf16.msra.mxu0 %v1364
    %1517 = vmatpush.bf16.msra.mxu0 %v1356
    %1518 = vmatmul.bf16.gmra.mxu0 %v1079
    %v1519 = vpop.f32.mrf.mxu0
    %v1520 = vadd.f32 %v1148, %v1519
    %v1521 = vpop.f32.mrf.mxu0
    %v1522 = vadd.f32 %v1148, %v1521
    %1523 = vdwg.mxu0
    %1524 = vmatpush.bf16.msra.mxu0 %v1413
    %1525 = vmatpush.bf16.msra.mxu0 %v1405
    %1526 = vmatpush.bf16.msra.mxu0 %v1397
    %1527 = vmatpush.bf16.msra.mxu0 %v1389
    %1528 = vmatpush.bf16.msra.mxu0 %v1381
    %1529 = vmatpush.bf16.msra.mxu0 %v1373
    %1530 = vmatpush.bf16.msra.mxu0 %v1365
    %1531 = vmatpush.bf16.msra.mxu0 %v1357
    %1532 = vmatmul.bf16.gmra.mxu0 %v1079
    %v1533 = vpop.f32.mrf.mxu0
    %v1534 = vadd.f32 %v1149, %v1533
    %v1535 = vpop.f32.mrf.mxu0
    %v1536 = vadd.f32 %v1149, %v1535
    %1537 = vdwg.mxu0
    %1538 = vmatpush.bf16.msra.mxu0 %v1414
    %1539 = vmatpush.bf16.msra.mxu0 %v1406
    %1540 = vmatpush.bf16.msra.mxu0 %v1398
    %1541 = vmatpush.bf16.msra.mxu0 %v1390
    %1542 = vmatpush.bf16.msra.mxu0 %v1382
    %1543 = vmatpush.bf16.msra.mxu0 %v1374
    %1544 = vmatpush.bf16.msra.mxu0 %v1366
    %1545 = vmatpush.bf16.msra.mxu0 %v1358
    %1546 = vmatmul.bf16.gmra.mxu0 %v1079
    %v1547 = vpop.f32.mrf.mxu0
    %v1548 = vadd.f32 %v1150, %v1547
    %v1549 = vpop.f32.mrf.mxu0
    %v1550 = vadd.f32 %v1150, %v1549
    %1551 = vdwg.mxu0
    %1552 = vmatpush.bf16.msra.mxu0 %v1415
    %1553 = vmatpush.bf16.msra.mxu0 %v1407
    %1554 = vmatpush.bf16.msra.mxu0 %v1399
    %1555 = vmatpush.bf16.msra.mxu0 %v1391
    %1556 = vmatpush.bf16.msra.mxu0 %v1383
    %1557 = vmatpush.bf16.msra.mxu0 %v1375
    %1558 = vmatpush.bf16.msra.mxu0 %v1367
    %1559 = vmatpush.bf16.msra.mxu0 %v1359
    %1560 = vmatmul.bf16.gmra.mxu0 %v1079
    %v1561 = vpop.f32.mrf.mxu0
    %v1562 = vadd.f32 %v1151, %v1561
    %v1563 = vpop.f32.mrf.mxu0
    %v1564 = vadd.f32 %v1151, %v1563
    %1565 = vdwg.mxu0
    %1566 = vmatpush.bf16.msra.mxu0 %v1416
    %1567 = vmatpush.bf16.msra.mxu0 %v1408
    %1568 = vmatpush.bf16.msra.mxu0 %v1400
    %1569 = vmatpush.bf16.msra.mxu0 %v1392
    %1570 = vmatpush.bf16.msra.mxu0 %v1384
    %1571 = vmatpush.bf16.msra.mxu0 %v1376
    %1572 = vmatpush.bf16.msra.mxu0 %v1368
    %1573 = vmatpush.bf16.msra.mxu0 %v1360
    %1574 = vmatmul.bf16.gmra.mxu0 %v1079
    %v1575 = vpop.f32.mrf.mxu0
    %v1576 = vadd.f32 %v1152, %v1575
    %v1577 = vpop.f32.mrf.mxu0
    %v1578 = vadd.f32 %v1152, %v1577
    %1579 = vdwg.mxu0
    %1580 = vmatpush.bf16.msra.mxu0 %v1417
    %1581 = vmatpush.bf16.msra.mxu0 %v1409
    %1582 = vmatpush.bf16.msra.mxu0 %v1401
    %1583 = vmatpush.bf16.msra.mxu0 %v1393
    %1584 = vmatpush.bf16.msra.mxu0 %v1385
    %1585 = vmatpush.bf16.msra.mxu0 %v1377
    %1586 = vmatpush.bf16.msra.mxu0 %v1369
    %1587 = vmatpush.bf16.msra.mxu0 %v1361
    %1588 = vmatmul.bf16.gmra.mxu0 %v1079
    %v1589 = vpop.f32.mrf.mxu0
    %v1590 = vadd.f32 %v1153, %v1589
    %v1591 = vpop.f32.mrf.mxu0
    %v1592 = vadd.f32 %v1153, %v1591
    %1593 = vdwg.mxu0
    %v1594 = vxor.u32 %v1492, 2147483648
    %v1595 = vxor.u32 %v1506, 2147483648
    %v1596 = vxor.u32 %v1520, 2147483648
    %v1597 = vxor.u32 %v1534, 2147483648
    %v1598 = vxor.u32 %v1548, 2147483648
    %v1599 = vxor.u32 %v1562, 2147483648
    %v1600 = vxor.u32 %v1576, 2147483648
    %v1601 = vxor.u32 %v1590, 2147483648
    %v1602 = vxor.u32 %v1494, 2147483648
    %v1603 = vxor.u32 %v1508, 2147483648
    %v1604 = vxor.u32 %v1522, 2147483648
    %v1605 = vxor.u32 %v1536, 2147483648
    %v1606 = vxor.u32 %v1550, 2147483648
    %v1607 = vxor.u32 %v1564, 2147483648
    %v1608 = vxor.u32 %v1578, 2147483648
    %v1609 = vxor.u32 %v1592, 2147483648
    %v1610 = vmul.f32 %v1594, 1.442695
    %v1611 = vpow.pop %v1610
    %v1612 = vmul.f32 %v1595, 1.442695
    %v1613 = vpow.pop %v1612
    %v1614 = vmul.f32 %v1596, 1.442695
    %v1615 = vpow.pop %v1614
    %v1616 = vmul.f32 %v1597, 1.442695
    %v1617 = vpow.pop %v1616
    %v1618 = vmul.f32 %v1598, 1.442695
    %v1619 = vpow.pop %v1618
    %v1620 = vmul.f32 %v1599, 1.442695
    %v1621 = vpow.pop %v1620
    %v1622 = vmul.f32 %v1600, 1.442695
    %v1623 = vpow.pop %v1622
    %v1624 = vmul.f32 %v1601, 1.442695
    %v1625 = vpow.pop %v1624
    %v1626 = vmul.f32 %v1602, 1.442695
    %v1627 = vpow.pop %v1626
    %v1628 = vmul.f32 %v1603, 1.442695
    %v1629 = vpow.pop %v1628
    %v1630 = vmul.f32 %v1604, 1.442695
    %v1631 = vpow.pop %v1630
    %v1632 = vmul.f32 %v1605, 1.442695
    %v1633 = vpow.pop %v1632
    %v1634 = vmul.f32 %v1606, 1.442695
    %v1635 = vpow.pop %v1634
    %v1636 = vmul.f32 %v1607, 1.442695
    %v1637 = vpow.pop %v1636
    %v1638 = vmul.f32 %v1608, 1.442695
    %v1639 = vpow.pop %v1638
    %v1640 = vmul.f32 %v1609, 1.442695
    %v1641 = vpow.pop %v1640
    %v1642 = vadd.f32 %v1611, 1.0
    %v1643 = vadd.f32 %v1613, 1.0
    %v1644 = vadd.f32 %v1615, 1.0
    %v1645 = vadd.f32 %v1617, 1.0
    %v1646 = vadd.f32 %v1619, 1.0
    %v1647 = vadd.f32 %v1621, 1.0
    %v1648 = vadd.f32 %v1623, 1.0
    %v1649 = vadd.f32 %v1625, 1.0
    %v1650 = vadd.f32 %v1627, 1.0
    %v1651 = vadd.f32 %v1629, 1.0
    %v1652 = vadd.f32 %v1631, 1.0
    %v1653 = vadd.f32 %v1633, 1.0
    %v1654 = vadd.f32 %v1635, 1.0
    %v1655 = vadd.f32 %v1637, 1.0
    %v1656 = vadd.f32 %v1639, 1.0
    %v1657 = vadd.f32 %v1641, 1.0
    %v1658 = vrcp.pop %v1642
    %v1659 = vmul.f32 %v1642, %v1658
    %v1660 = vsub.f32 1.0, %v1659
    %v1661 = vmul.f32 %v1658, %v1660
    %v1662 = vadd.f32 %v1658, %v1661
    %vm1663 = vweird.f32 %v1642
    %vm1664 = vweird.f32 %v1658
    %vm1665 = vmor %vm1663, %vm1664
    %v1666 = vsel %vm1665, %v1658, %v1662
    %v1667 = vand.u32 2147483647, %v1642
    %vm1668 = vcmp.eq.f32.partialorder %v1667, 8.507059e+37
    %v1669 = vand.u32 %v1642, 2147483648
    %v1670 = vor.u32 1.1754944e-38, %v1669
    %v1671 = vsel %vm1668, %v1670, %v1666
    %v1672 = vmul.f32 1.0, %v1671
    %v1673 = vrcp.pop %v1643
    %v1674 = vmul.f32 %v1643, %v1673
    %v1675 = vsub.f32 1.0, %v1674
    %v1676 = vmul.f32 %v1673, %v1675
    %v1677 = vadd.f32 %v1673, %v1676
    %vm1678 = vweird.f32 %v1643
    %vm1679 = vweird.f32 %v1673
    %vm1680 = vmor %vm1678, %vm1679
    %v1681 = vsel %vm1680, %v1673, %v1677
    %v1682 = vand.u32 2147483647, %v1643
    %vm1683 = vcmp.eq.f32.partialorder %v1682, 8.507059e+37
    %v1684 = vand.u32 %v1643, 2147483648
    %v1685 = vor.u32 1.1754944e-38, %v1684
    %v1686 = vsel %vm1683, %v1685, %v1681
    %v1687 = vmul.f32 1.0, %v1686
    %v1688 = vrcp.pop %v1644
    %v1689 = vmul.f32 %v1644, %v1688
    %v1690 = vsub.f32 1.0, %v1689
    %v1691 = vmul.f32 %v1688, %v1690
    %v1692 = vadd.f32 %v1688, %v1691
    %vm1693 = vweird.f32 %v1644
    %vm1694 = vweird.f32 %v1688
    %vm1695 = vmor %vm1693, %vm1694
    %v1696 = vsel %vm1695, %v1688, %v1692
    %v1697 = vand.u32 2147483647, %v1644
    %vm1698 = vcmp.eq.f32.partialorder %v1697, 8.507059e+37
    %v1699 = vand.u32 %v1644, 2147483648
    %v1700 = vor.u32 1.1754944e-38, %v1699
    %v1701 = vsel %vm1698, %v1700, %v1696
    %v1702 = vmul.f32 1.0, %v1701
    %v1703 = vrcp.pop %v1645
    %v1704 = vmul.f32 %v1645, %v1703
    %v1705 = vsub.f32 1.0, %v1704
    %v1706 = vmul.f32 %v1703, %v1705
    %v1707 = vadd.f32 %v1703, %v1706
    %vm1708 = vweird.f32 %v1645
    %vm1709 = vweird.f32 %v1703
    %vm1710 = vmor %vm1708, %vm1709
    %v1711 = vsel %vm1710, %v1703, %v1707
    %v1712 = vand.u32 2147483647, %v1645
    %vm1713 = vcmp.eq.f32.partialorder %v1712, 8.507059e+37
    %v1714 = vand.u32 %v1645, 2147483648
    %v1715 = vor.u32 1.1754944e-38, %v1714
    %v1716 = vsel %vm1713, %v1715, %v1711
    %v1717 = vmul.f32 1.0, %v1716
    %v1718 = vrcp.pop %v1646
    %v1719 = vmul.f32 %v1646, %v1718
    %v1720 = vsub.f32 1.0, %v1719
    %v1721 = vmul.f32 %v1718, %v1720
    %v1722 = vadd.f32 %v1718, %v1721
    %vm1723 = vweird.f32 %v1646
    %vm1724 = vweird.f32 %v1718
    %vm1725 = vmor %vm1723, %vm1724
    %v1726 = vsel %vm1725, %v1718, %v1722
    %v1727 = vand.u32 2147483647, %v1646
    %vm1728 = vcmp.eq.f32.partialorder %v1727, 8.507059e+37
    %v1729 = vand.u32 %v1646, 2147483648
    %v1730 = vor.u32 1.1754944e-38, %v1729
    %v1731 = vsel %vm1728, %v1730, %v1726
    %v1732 = vmul.f32 1.0, %v1731
    %v1733 = vrcp.pop %v1647
    %v1734 = vmul.f32 %v1647, %v1733
    %v1735 = vsub.f32 1.0, %v1734
    %v1736 = vmul.f32 %v1733, %v1735
    %v1737 = vadd.f32 %v1733, %v1736
    %vm1738 = vweird.f32 %v1647
    %vm1739 = vweird.f32 %v1733
    %vm1740 = vmor %vm1738, %vm1739
    %v1741 = vsel %vm1740, %v1733, %v1737
    %v1742 = vand.u32 2147483647, %v1647
    %vm1743 = vcmp.eq.f32.partialorder %v1742, 8.507059e+37
    %v1744 = vand.u32 %v1647, 2147483648
    %v1745 = vor.u32 1.1754944e-38, %v1744
    %v1746 = vsel %vm1743, %v1745, %v1741
    %v1747 = vmul.f32 1.0, %v1746
    %v1748 = vrcp.pop %v1648
    %v1749 = vmul.f32 %v1648, %v1748
    %v1750 = vsub.f32 1.0, %v1749
    %v1751 = vmul.f32 %v1748, %v1750
    %v1752 = vadd.f32 %v1748, %v1751
    %vm1753 = vweird.f32 %v1648
    %vm1754 = vweird.f32 %v1748
    %vm1755 = vmor %vm1753, %vm1754
    %v1756 = vsel %vm1755, %v1748, %v1752
    %v1757 = vand.u32 2147483647, %v1648
    %vm1758 = vcmp.eq.f32.partialorder %v1757, 8.507059e+37
    %v1759 = vand.u32 %v1648, 2147483648
    %v1760 = vor.u32 1.1754944e-38, %v1759
    %v1761 = vsel %vm1758, %v1760, %v1756
    %v1762 = vmul.f32 1.0, %v1761
    %v1763 = vrcp.pop %v1649
    %v1764 = vmul.f32 %v1649, %v1763
    %v1765 = vsub.f32 1.0, %v1764
    %v1766 = vmul.f32 %v1763, %v1765
    %v1767 = vadd.f32 %v1763, %v1766
    %vm1768 = vweird.f32 %v1649
    %vm1769 = vweird.f32 %v1763
    %vm1770 = vmor %vm1768, %vm1769
    %v1771 = vsel %vm1770, %v1763, %v1767
    %v1772 = vand.u32 2147483647, %v1649
    %vm1773 = vcmp.eq.f32.partialorder %v1772, 8.507059e+37
    %v1774 = vand.u32 %v1649, 2147483648
    %v1775 = vor.u32 1.1754944e-38, %v1774
    %v1776 = vsel %vm1773, %v1775, %v1771
    %v1777 = vmul.f32 1.0, %v1776
    %v1778 = vrcp.pop %v1650
    %v1779 = vmul.f32 %v1650, %v1778
    %v1780 = vsub.f32 1.0, %v1779
    %v1781 = vmul.f32 %v1778, %v1780
    %v1782 = vadd.f32 %v1778, %v1781
    %vm1783 = vweird.f32 %v1650
    %vm1784 = vweird.f32 %v1778
    %vm1785 = vmor %vm1783, %vm1784
    %v1786 = vsel %vm1785, %v1778, %v1782
    %v1787 = vand.u32 2147483647, %v1650
    %vm1788 = vcmp.eq.f32.partialorder %v1787, 8.507059e+37
    %v1789 = vand.u32 %v1650, 2147483648
    %v1790 = vor.u32 1.1754944e-38, %v1789
    %v1791 = vsel %vm1788, %v1790, %v1786
    %v1792 = vmul.f32 1.0, %v1791
    %v1793 = vrcp.pop %v1651
    %v1794 = vmul.f32 %v1651, %v1793
    %v1795 = vsub.f32 1.0, %v1794
    %v1796 = vmul.f32 %v1793, %v1795
    %v1797 = vadd.f32 %v1793, %v1796
    %vm1798 = vweird.f32 %v1651
    %vm1799 = vweird.f32 %v1793
    %vm1800 = vmor %vm1798, %vm1799
    %v1801 = vsel %vm1800, %v1793, %v1797
    %v1802 = vand.u32 2147483647, %v1651
    %vm1803 = vcmp.eq.f32.partialorder %v1802, 8.507059e+37
    %v1804 = vand.u32 %v1651, 2147483648
    %v1805 = vor.u32 1.1754944e-38, %v1804
    %v1806 = vsel %vm1803, %v1805, %v1801
    %v1807 = vmul.f32 1.0, %v1806
    %v1808 = vrcp.pop %v1652
    %v1809 = vmul.f32 %v1652, %v1808
    %v1810 = vsub.f32 1.0, %v1809
    %v1811 = vmul.f32 %v1808, %v1810
    %v1812 = vadd.f32 %v1808, %v1811
    %vm1813 = vweird.f32 %v1652
    %vm1814 = vweird.f32 %v1808
    %vm1815 = vmor %vm1813, %vm1814
    %v1816 = vsel %vm1815, %v1808, %v1812
    %v1817 = vand.u32 2147483647, %v1652
    %vm1818 = vcmp.eq.f32.partialorder %v1817, 8.507059e+37
    %v1819 = vand.u32 %v1652, 2147483648
    %v1820 = vor.u32 1.1754944e-38, %v1819
    %v1821 = vsel %vm1818, %v1820, %v1816
    %v1822 = vmul.f32 1.0, %v1821
    %v1823 = vrcp.pop %v1653
    %v1824 = vmul.f32 %v1653, %v1823
    %v1825 = vsub.f32 1.0, %v1824
    %v1826 = vmul.f32 %v1823, %v1825
    %v1827 = vadd.f32 %v1823, %v1826
    %vm1828 = vweird.f32 %v1653
    %vm1829 = vweird.f32 %v1823
    %vm1830 = vmor %vm1828, %vm1829
    %v1831 = vsel %vm1830, %v1823, %v1827
    %v1832 = vand.u32 2147483647, %v1653
    %vm1833 = vcmp.eq.f32.partialorder %v1832, 8.507059e+37
    %v1834 = vand.u32 %v1653, 2147483648
    %v1835 = vor.u32 1.1754944e-38, %v1834
    %v1836 = vsel %vm1833, %v1835, %v1831
    %v1837 = vmul.f32 1.0, %v1836
    %v1838 = vrcp.pop %v1654
    %v1839 = vmul.f32 %v1654, %v1838
    %v1840 = vsub.f32 1.0, %v1839
    %v1841 = vmul.f32 %v1838, %v1840
    %v1842 = vadd.f32 %v1838, %v1841
    %vm1843 = vweird.f32 %v1654
    %vm1844 = vweird.f32 %v1838
    %vm1845 = vmor %vm1843, %vm1844
    %v1846 = vsel %vm1845, %v1838, %v1842
    %v1847 = vand.u32 2147483647, %v1654
    %vm1848 = vcmp.eq.f32.partialorder %v1847, 8.507059e+37
    %v1849 = vand.u32 %v1654, 2147483648
    %v1850 = vor.u32 1.1754944e-38, %v1849
    %v1851 = vsel %vm1848, %v1850, %v1846
    %v1852 = vmul.f32 1.0, %v1851
    %v1853 = vrcp.pop %v1655
    %v1854 = vmul.f32 %v1655, %v1853
    %v1855 = vsub.f32 1.0, %v1854
    %v1856 = vmul.f32 %v1853, %v1855
    %v1857 = vadd.f32 %v1853, %v1856
    %vm1858 = vweird.f32 %v1655
    %vm1859 = vweird.f32 %v1853
    %vm1860 = vmor %vm1858, %vm1859
    %v1861 = vsel %vm1860, %v1853, %v1857
    %v1862 = vand.u32 2147483647, %v1655
    %vm1863 = vcmp.eq.f32.partialorder %v1862, 8.507059e+37
    %v1864 = vand.u32 %v1655, 2147483648
    %v1865 = vor.u32 1.1754944e-38, %v1864
    %v1866 = vsel %vm1863, %v1865, %v1861
    %v1867 = vmul.f32 1.0, %v1866
    %v1868 = vrcp.pop %v1656
    %v1869 = vmul.f32 %v1656, %v1868
    %v1870 = vsub.f32 1.0, %v1869
    %v1871 = vmul.f32 %v1868, %v1870
    %v1872 = vadd.f32 %v1868, %v1871
    %vm1873 = vweird.f32 %v1656
    %vm1874 = vweird.f32 %v1868
    %vm1875 = vmor %vm1873, %vm1874
    %v1876 = vsel %vm1875, %v1868, %v1872
    %v1877 = vand.u32 2147483647, %v1656
    %vm1878 = vcmp.eq.f32.partialorder %v1877, 8.507059e+37
    %v1879 = vand.u32 %v1656, 2147483648
    %v1880 = vor.u32 1.1754944e-38, %v1879
    %v1881 = vsel %vm1878, %v1880, %v1876
    %v1882 = vmul.f32 1.0, %v1881
    %v1883 = vrcp.pop %v1657
    %v1884 = vmul.f32 %v1657, %v1883
    %v1885 = vsub.f32 1.0, %v1884
    %v1886 = vmul.f32 %v1883, %v1885
    %v1887 = vadd.f32 %v1883, %v1886
    %vm1888 = vweird.f32 %v1657
    %vm1889 = vweird.f32 %v1883
    %vm1890 = vmor %vm1888, %vm1889
    %v1891 = vsel %vm1890, %v1883, %v1887
    %v1892 = vand.u32 2147483647, %v1657
    %vm1893 = vcmp.eq.f32.partialorder %v1892, 8.507059e+37
    %v1894 = vand.u32 %v1657, 2147483648
    %v1895 = vor.u32 1.1754944e-38, %v1894
    %v1896 = vsel %vm1893, %v1895, %v1891
    %v1897 = vmul.f32 1.0, %v1896
    %1898 = vst [vmem:[#allocation17] sm:$0xff] %v1672
    %1899 = vst [vmem:[#allocation17 + $0x8] sm:$0xff] %v1687
    %1900 = vst [vmem:[#allocation17 + $0x10] sm:$0xff] %v1702
    %1901 = vst [vmem:[#allocation17 + $0x18] sm:$0xff] %v1717
    %1902 = vst [vmem:[#allocation17 + $0x20] sm:$0xff] %v1732
    %1903 = vst [vmem:[#allocation17 + $0x28] sm:$0xff] %v1747
    %1904 = vst [vmem:[#allocation17 + $0x30] sm:$0xff] %v1762
    %1905 = vst [vmem:[#allocation17 + $0x38] sm:$0xff] %v1777
    %1906 = vst [vmem:[#allocation17 + $0x40] sm:$0xff] %v1792
    %1907 = vst [vmem:[#allocation17 + $0x48] sm:$0xff] %v1807
    %1908 = vst [vmem:[#allocation17 + $0x50] sm:$0xff] %v1822
    %1909 = vst [vmem:[#allocation17 + $0x58] sm:$0xff] %v1837
    %1910 = vst [vmem:[#allocation17 + $0x60] sm:$0xff] %v1852
    %1911 = vst [vmem:[#allocation17 + $0x68] sm:$0xff] %v1867
    %1912 = vst [vmem:[#allocation17 + $0x70] sm:$0xff] %v1882
    %1913 = vst [vmem:[#allocation17 + $0x78] sm:$0xff] %v1897
    %1914 = vst [vmem:[#allocation18] sm:$0xff] %v964
    %1915 = vst [vmem:[#allocation18 + $0x8] sm:$0xff] %v978
    %1916 = vst [vmem:[#allocation18 + $0x10] sm:$0xff] %v966
    %1917 = vst [vmem:[#allocation18 + $0x18] sm:$0xff] %v980
    // Predicated region
    $region78: #{tpu_custom_call.1} parent=1 // pred_check
      _
    $region79: #{tpu_custom_call.1} parent=1 // pred_check_branch
      %1919 = sbr.rel (0) target = $region81
    $region80: #{tpu_custom_call.1} parent=1 // pred_region
      %1921 = vsyncadd [#allocation4], 0
      %s1922 = sshll.u32 [#allocation17], 4
      %s1923 = int_to_ptr.vmem [resolvable:$true] %s1922
      %s1924 = sshll.u32 %s10, 4
      %s1925 = int_to_ptr.hbm [resolvable:$true] %s1924
      %1930 = dma.vmem_to_hbm [thread:$0]  %s1923, 2048, %s1925, [#allocation4], 1024, 1024, 64
    $region81: #{tpu_custom_call.1} parent=1 // pred_fallthru
      _
    // Predicated region
    $region82: #{tpu_custom_call.1} parent=1 // pred_check
      _
    $region83: #{tpu_custom_call.1} parent=1 // pred_check_branch
      %1932 = sbr.rel (0) target = $region85
    $region84: #{tpu_custom_call.1} parent=1 // pred_region
      %1934 = vsyncadd [#allocation19], 0
      %s1935 = sshll.u32 [#allocation18], 4
      %s1936 = int_to_ptr.vmem [resolvable:$true] %s1935
      %s1937 = sshll.u32 %s11, 4
      %s1938 = int_to_ptr.hbm [resolvable:$true] %s1937
      %1943 = dma.vmem_to_hbm [thread:$0]  %s1936, 512, %s1938, [#allocation19], 256, 256, 16
    $region85: #{tpu_custom_call.1} parent=1 // pred_fallthru
      _
    // Predicated region
    $region86: #{tpu_custom_call.1} parent=1 // pred_check
      _
    $region87: #{tpu_custom_call.1} parent=1 // pred_check_branch
      %1945 = sbr.rel (0) target = $region89
    $region88: #{tpu_custom_call.1} parent=1 // pred_region
      %1947 = dma.done [#allocation4], 2048
    $region89: #{tpu_custom_call.1} parent=1 // pred_fallthru
      _
    // Predicated region
    $region90: #{tpu_custom_call.1} parent=1 // pred_check
      _
    $region91: #{tpu_custom_call.1} parent=1 // pred_check_branch
      %1949 = sbr.rel (0) target = $region93
    $region92: #{tpu_custom_call.1} parent=1 // pred_region
      %1951 = dma.done [#allocation19], 512
    $region93: #{tpu_custom_call.1} parent=1 // pred_fallthru
      _
    %1952 = vsyncpa [#allocation3], 1
    %1953 = vsyncpa [#allocation6], 1
    %1954 = vsyncpa [#allocation9], 1
    %1955 = vsyncpa [#allocation12], 1
    %1956 = vsyncpa [#allocation15], 1
    %1957 = vsyncpa [#allocation4], 1
    %1958 = vsyncpa [#allocation19], 1

</llo_original>
